<compile_context>
chip_gen: v6e
topology: v6e:2x2x1
jax: 0.10.0
libtpu: 0.0.40
codegen_flags: <defaults>
</compile_context>

<pallas_src>
import jax
import jax.numpy as jnp
import numpy as np
from jax import lax
from jax.experimental import pallas as pl
from jax.experimental.pallas import tpu as pltpu

EPS = 1e-5
SCALE_ADAPTER = 1.0  # module sets self.scale_adapter = 1
LANES = 128


def _adapter_kernel(p_ref, wf_ref, g1_ref, b1_ref, wpw_ref, g2_ref, b2_ref,
                    wup_ref, out_ref):
    # p_ref : (R, 2*9*Cin) f32   im2col patches, two spatial positions per row
    # wf_ref: (2*9*Cin, 128) f32 fused Down+DW weight (block-diag over halves)
    # wpw   : (128, 128) bf16    pointwise weight (block-diag)
    # wup   : (128, 128) bf16    Up weight, zero-padded to 128 output lanes
    # g*/b* : (1, 128) f32       gamma/beta tiled over both packed halves
    R = p_ref.shape[0]
    inv_n = 1.0 / float(2 * R)          # BN averages over all N*H*W positions

    def bn_relu(y, g_ref, b_ref):
        # y: (R, 128) packed - lanes [0:64] even positions, [64:128] odd
        # positions, same 64 channels in both halves.
        s = jnp.sum(y, axis=0, keepdims=True)
        sq = jnp.sum(y * y, axis=0, keepdims=True)
        # Fold the two lane-halves so every lane holds the full per-channel sum.
        s = s + pltpu.roll(s, shift=64, axis=1)
        sq = sq + pltpu.roll(sq, shift=64, axis=1)
        mean = s * inv_n
        # One-pass biased variance (PyTorch train-mode BN).
        # TODO(synk): switch to two-pass / block-merge stats when row-band
        # tiling is added at larger H*W.
        var = sq * inv_n - mean * mean
        yh = (y - mean) * lax.rsqrt(var + EPS)
        return jnp.maximum(yh * g_ref[...] + b_ref[...], 0.0)

    # Fused Down(1x1) + depthwise 3x3 as a single im2col matmul (f32 operands,
    # f32 accumulation on the MXU).
    dw = jnp.dot(p_ref[...], wf_ref[...], preferred_element_type=jnp.float32)
    h1 = bn_relu(dw, g1_ref, b1_ref)

    # Pointwise 1x1 conv (128x128 block-diag) + BN + ReLU; bf16 operands.
    a2 = jnp.dot(h1.astype(jnp.bfloat16), wpw_ref[...],
                 preferred_element_type=jnp.float32)
    h2 = bn_relu(a2, g2_ref, b2_ref)

    # Up 1x1 conv; weight zero-padded to 128 lanes so the store is lane-dense.
    up = jnp.dot(h2.astype(jnp.bfloat16), wup_ref[...],
                 preferred_element_type=jnp.float32)
    out_ref[...] = up * SCALE_ADAPTER


def structure_adapter_forward(x_nchw, params):
    """Pallas version of Structure_Adapter.forward. Input/output NCHW."""
    N, Cin, H, W = x_nchw.shape
    w_down, w_dw = params["w_down"], params["w_dw"]
    w_pw, w_up = params["w_pw"], params["w_up"]
    g1, b1, g2, b2 = params["g1"], params["b1"], params["g2"], params["b2"]
    Cmid = w_down.shape[0]
    assert w_dw.shape == (Cmid, 1, 3, 3)
    assert w_pw.shape == (Cmid, Cmid, 1, 1) and w_up.shape == (Cin, Cmid, 1, 1)
    assert 2 * Cmid == LANES, "lane packing assumes mid_channels == 64"
    NHW = N * H * W
    assert NHW % 2 == 0
    R = NHW // 2
    K = 9 * Cin

    # ---- layout plumbing (wrapper side, zero FLOPs) --------------------------
    # im2col over the 4-channel input, then pack two consecutive spatial
    # positions per row -> (NHW/2, 2*9*Cin). f32 (no bf16 cast of the input).
    x_nhwc = jnp.transpose(x_nchw, (0, 2, 3, 1))
    xpad = jnp.pad(x_nhwc, ((0, 0), (1, 1), (1, 1), (0, 0)))
    taps = [xpad[:, dy:dy + H, dx:dx + W, :] for dy in range(3) for dx in range(3)]
    patches = jnp.concatenate(taps, axis=-1).reshape(R, 2 * K).astype(jnp.float32)

    # Fused Down+DW weight: Wf[(dy,dx,cin), c] = wdw[c,dy,dx] * wdown[c,cin];
    # block-diagonal over the two packed position halves -> (2K, 128) f32.
    wdown2 = w_down[:, :, 0, 0]                       # (Cmid, Cin)
    wdw2 = w_dw[:, 0, :, :]                           # (Cmid, 3, 3)
    w_fused = jnp.einsum("cyx,ci->yxic", wdw2, wdown2).reshape(K, Cmid)
    wf = jnp.zeros((2 * K, LANES), jnp.float32)
    wf = wf.at[:K, :Cmid].set(w_fused).at[K:, Cmid:].set(w_fused)

    # Pointwise 1x1 weight: block-diag (128, 128), bf16 operands.
    wpw_km = jnp.transpose(w_pw[:, :, 0, 0])          # (Cmid_in, Cmid_out)
    wpw = jnp.zeros((LANES, LANES), jnp.float32)
    wpw = wpw.at[:Cmid, :Cmid].set(wpw_km).at[Cmid:, Cmid:].set(wpw_km)
    wpw = wpw.astype(jnp.bfloat16)

    # Up 1x1 weight: even half -> output lanes [0:Cin], odd half -> [Cin:2Cin],
    # remaining output lanes zero (keeps the final store 128-lane dense).
    wup_km = jnp.transpose(w_up[:, :, 0, 0])          # (Cmid, Cin)
    wup = jnp.zeros((LANES, LANES), jnp.float32)
    wup = wup.at[:Cmid, :Cin].set(wup_km).at[Cmid:, Cin:2 * Cin].set(wup_km)
    wup = wup.astype(jnp.bfloat16)

    # gamma/beta tiled to 128 lanes (same per-channel params in both halves).
    g1t = jnp.tile(g1.reshape(1, Cmid), (1, 2))
    b1t = jnp.tile(b1.reshape(1, Cmid), (1, 2))
    g2t = jnp.tile(g2.reshape(1, Cmid), (1, 2))
    b2t = jnp.tile(b2.reshape(1, Cmid), (1, 2))

    vmem = pl.BlockSpec(memory_space=pltpu.MemorySpace.VMEM)
    out_packed = pl.pallas_call(
        _adapter_kernel,
        out_shape=jax.ShapeDtypeStruct((R, LANES), jnp.float32),
        in_specs=[vmem] * 8,
        out_specs=vmem,
        compiler_params=pltpu.CompilerParams(vmem_limit_bytes=32 * 1024 * 1024),
    )(patches, wf, g1t, b1t, wpw, g2t, b2t, wup)

    # lanes [0 : 2*Cin] carry (even-position channels, odd-position channels).
    out_nhwc = out_packed[:, :2 * Cin].reshape(N, H, W, Cin)
    return jnp.transpose(out_nhwc, (0, 3, 1, 2))


def structure_adapter_reference(x, params):
    """Pure-JAX (f32) reference of the PyTorch forward, NCHW."""
    dn = ("NCHW", "OIHW", "NCHW")
    hp = lax.Precision.HIGHEST
    Cmid = params["w_down"].shape[0]

    d = lax.conv_general_dilated(x, params["w_down"], (1, 1), "VALID",
                                 dimension_numbers=dn, precision=hp)
    dw = lax.conv_general_dilated(d, params["w_dw"], (1, 1), ((1, 1), (1, 1)),
                                  dimension_numbers=dn,
                                  feature_group_count=Cmid, precision=hp)

    def bn_relu(y, g, b):
        mean = jnp.mean(y, axis=(0, 2, 3), keepdims=True)
        var = jnp.mean((y - mean) ** 2, axis=(0, 2, 3), keepdims=True)
        yh = (y - mean) * lax.rsqrt(var + EPS)
        return jnp.maximum(yh * g.reshape(1, -1, 1, 1) + b.reshape(1, -1, 1, 1), 0.0)

    h1 = bn_relu(dw, params["g1"], params["b1"])
    p = lax.conv_general_dilated(h1, params["w_pw"], (1, 1), "VALID",
                                 dimension_numbers=dn, precision=hp)
    h2 = bn_relu(p, params["g2"], params["b2"])
    u = lax.conv_general_dilated(h2, params["w_up"], (1, 1), "VALID",
                                 dimension_numbers=dn, precision=hp)
    return u * SCALE_ADAPTER


if __name__ == "__main__":
    key = jax.random.PRNGKey(0)
    N, Cin, H, W = 2, 4, 16, 16
    Cmid = 64                                     # module default mid_channels
    ks = jax.random.split(key, 9)

    x = jax.random.normal(ks[0], (N, Cin, H, W), jnp.float32)
    params = dict(
        w_down=0.5 * jax.random.normal(ks[1], (Cmid, Cin, 1, 1), jnp.float32),
        w_dw=0.3 * jax.random.normal(ks[2], (Cmid, 1, 3, 3), jnp.float32),
        g1=1.0 + 0.1 * jax.random.normal(ks[3], (Cmid,), jnp.float32),
        b1=0.1 * jax.random.normal(ks[4], (Cmid,), jnp.float32),
        w_pw=0.2 * jax.random.normal(ks[5], (Cmid, Cmid, 1, 1), jnp.float32),
        g2=1.0 + 0.1 * jax.random.normal(ks[6], (Cmid,), jnp.float32),
        b2=0.1 * jax.random.normal(ks[7], (Cmid,), jnp.float32),
        w_up=0.2 * jax.random.normal(ks[8], (Cin, Cmid, 1, 1), jnp.float32),
    )

    out = jax.block_until_ready(structure_adapter_forward(x, params))
    assert out.shape == (N, Cin, H, W)

    ref = structure_adapter_reference(x, params)
    # Tolerance covers the deliberate bf16 MXU operands of the pointwise / Up
    # matmuls (f32 accumulation, f32 BN/ReLU); reference is full f32.
    np.testing.assert_allclose(np.asarray(out), np.asarray(ref), rtol=5e-2, atol=5e-2)
    print("KERNEL_OK")
</pallas_src>

<mosaic_0001>
module attributes {stable_mosaic.version = 11 : i64} {
  func.func @_adapter_kernel(%arg0: memref<256x72xf32, #tpu.memory_space<vmem>>, %arg1: memref<72x128xf32, #tpu.memory_space<vmem>>, %arg2: memref<1x128xf32, #tpu.memory_space<vmem>>, %arg3: memref<1x128xf32, #tpu.memory_space<vmem>>, %arg4: memref<128x128xbf16, #tpu.memory_space<vmem>>, %arg5: memref<1x128xf32, #tpu.memory_space<vmem>>, %arg6: memref<1x128xf32, #tpu.memory_space<vmem>>, %arg7: memref<128x128xbf16, #tpu.memory_space<vmem>>, %arg8: memref<256x128xf32, #tpu.memory_space<vmem>>) attributes {dimension_semantics = [], scalar_prefetch = 0 : i64, scratch_operands = 0 : i64, tpu.core_type = #tpu.core_type<tc>} {
    %c0 = arith.constant 0 : index
    %c0_0 = arith.constant 0 : index
    %0 = vector.load %arg0[%c0, %c0_0] : memref<256x72xf32, #tpu.memory_space<vmem>>, vector<256x72xf32>
    %c0_1 = arith.constant 0 : index
    %c0_2 = arith.constant 0 : index
    %1 = vector.load %arg1[%c0_1, %c0_2] : memref<72x128xf32, #tpu.memory_space<vmem>>, vector<72x128xf32>
    %cst = arith.constant dense<0.000000e+00> : vector<256x128xf32>
    %2 = tpu.matmul %0, %1, %cst {dimension_numbers = #tpu.dot_dimension_numbers<[1], [0], [0], [1], [0, 0, 1, 1], [], []>} : vector<256x72xf32>, vector<72x128xf32>, vector<256x128xf32> -> vector<256x128xf32>
    %cst_3 = arith.constant dense<0.000000e+00> : vector<128xf32>
    %3 = vector.multi_reduction <add>, %2, %cst_3 [0] : vector<256x128xf32> to vector<128xf32>
    %4 = vector.shape_cast %3 : vector<128xf32> to vector<1x128xf32>
    %5 = arith.mulf %2, %2 : vector<256x128xf32>
    %cst_4 = arith.constant dense<0.000000e+00> : vector<128xf32>
    %6 = vector.multi_reduction <add>, %5, %cst_4 [0] : vector<256x128xf32> to vector<128xf32>
    %7 = vector.shape_cast %6 : vector<128xf32> to vector<1x128xf32>
    %c64_i32 = arith.constant 64 : i32
    %8 = tpu.dynamic_rotate %4 by %c64_i32 dim 1 : vector<1x128xf32>, i32 -> vector<1x128xf32>
    %9 = arith.addf %4, %8 : vector<1x128xf32>
    %c64_i32_5 = arith.constant 64 : i32
    %10 = tpu.dynamic_rotate %7 by %c64_i32_5 dim 1 : vector<1x128xf32>, i32 -> vector<1x128xf32>
    %11 = arith.addf %7, %10 : vector<1x128xf32>
    %cst_6 = arith.constant 0.001953125 : f32
    %12 = vector.broadcast %cst_6 : f32 to vector<1x128xf32>
    %13 = arith.mulf %9, %12 : vector<1x128xf32>
    %cst_7 = arith.constant 0.001953125 : f32
    %14 = vector.broadcast %cst_7 : f32 to vector<1x128xf32>
    %15 = arith.mulf %11, %14 : vector<1x128xf32>
    %16 = arith.mulf %13, %13 : vector<1x128xf32>
    %17 = arith.subf %15, %16 : vector<1x128xf32>
    %18 = vector.broadcast %13 : vector<1x128xf32> to vector<256x128xf32>
    %19 = arith.subf %2, %18 : vector<256x128xf32>
    %cst_8 = arith.constant 9.99999974E-6 : f32
    %20 = vector.broadcast %cst_8 : f32 to vector<1x128xf32>
    %21 = arith.addf %17, %20 : vector<1x128xf32>
    %22 = math.rsqrt %21 : vector<1x128xf32>
    %23 = vector.broadcast %22 : vector<1x128xf32> to vector<256x128xf32>
    %24 = arith.mulf %19, %23 : vector<256x128xf32>
    %c0_9 = arith.constant 0 : index
    %c0_10 = arith.constant 0 : index
    %25 = vector.load %arg2[%c0_9, %c0_10] : memref<1x128xf32, #tpu.memory_space<vmem>>, vector<1x128xf32>
    %26 = vector.broadcast %25 : vector<1x128xf32> to vector<256x128xf32>
    %27 = arith.mulf %24, %26 : vector<256x128xf32>
    %c0_11 = arith.constant 0 : index
    %c0_12 = arith.constant 0 : index
    %28 = vector.load %arg3[%c0_11, %c0_12] : memref<1x128xf32, #tpu.memory_space<vmem>>, vector<1x128xf32>
    %29 = vector.broadcast %28 : vector<1x128xf32> to vector<256x128xf32>
    %30 = arith.addf %27, %29 : vector<256x128xf32>
    %cst_13 = arith.constant 0.000000e+00 : f32
    %31 = vector.broadcast %cst_13 : f32 to vector<256x128xf32>
    %32 = arith.maximumf %30, %31 : vector<256x128xf32>
    %33 = arith.truncf %32 : vector<256x128xf32> to vector<256x128xbf16>
    %c0_14 = arith.constant 0 : index
    %c0_15 = arith.constant 0 : index
    %34 = vector.load %arg4[%c0_14, %c0_15] : memref<128x128xbf16, #tpu.memory_space<vmem>>, vector<128x128xbf16>
    %cst_16 = arith.constant dense<0.000000e+00> : vector<256x128xf32>
    %35 = tpu.matmul %33, %34, %cst_16 {dimension_numbers = #tpu.dot_dimension_numbers<[1], [0], [0], [1], [0, 0, 1, 1], [], []>} : vector<256x128xbf16>, vector<128x128xbf16>, vector<256x128xf32> -> vector<256x128xf32>
    %cst_17 = arith.constant dense<0.000000e+00> : vector<128xf32>
    %36 = vector.multi_reduction <add>, %35, %cst_17 [0] : vector<256x128xf32> to vector<128xf32>
    %37 = vector.shape_cast %36 : vector<128xf32> to vector<1x128xf32>
    %38 = arith.mulf %35, %35 : vector<256x128xf32>
    %cst_18 = arith.constant dense<0.000000e+00> : vector<128xf32>
    %39 = vector.multi_reduction <add>, %38, %cst_18 [0] : vector<256x128xf32> to vector<128xf32>
    %40 = vector.shape_cast %39 : vector<128xf32> to vector<1x128xf32>
    %c64_i32_19 = arith.constant 64 : i32
    %41 = tpu.dynamic_rotate %37 by %c64_i32_19 dim 1 : vector<1x128xf32>, i32 -> vector<1x128xf32>
    %42 = arith.addf %37, %41 : vector<1x128xf32>
    %c64_i32_20 = arith.constant 64 : i32
    %43 = tpu.dynamic_rotate %40 by %c64_i32_20 dim 1 : vector<1x128xf32>, i32 -> vector<1x128xf32>
    %44 = arith.addf %40, %43 : vector<1x128xf32>
    %cst_21 = arith.constant 0.001953125 : f32
    %45 = vector.broadcast %cst_21 : f32 to vector<1x128xf32>
    %46 = arith.mulf %42, %45 : vector<1x128xf32>
    %cst_22 = arith.constant 0.001953125 : f32
    %47 = vector.broadcast %cst_22 : f32 to vector<1x128xf32>
    %48 = arith.mulf %44, %47 : vector<1x128xf32>
    %49 = arith.mulf %46, %46 : vector<1x128xf32>
    %50 = arith.subf %48, %49 : vector<1x128xf32>
    %51 = vector.broadcast %46 : vector<1x128xf32> to vector<256x128xf32>
    %52 = arith.subf %35, %51 : vector<256x128xf32>
    %cst_23 = arith.constant 9.99999974E-6 : f32
    %53 = vector.broadcast %cst_23 : f32 to vector<1x128xf32>
    %54 = arith.addf %50, %53 : vector<1x128xf32>
    %55 = math.rsqrt %54 : vector<1x128xf32>
    %56 = vector.broadcast %55 : vector<1x128xf32> to vector<256x128xf32>
    %57 = arith.mulf %52, %56 : vector<256x128xf32>
    %c0_24 = arith.constant 0 : index
    %c0_25 = arith.constant 0 : index
    %58 = vector.load %arg5[%c0_24, %c0_25] : memref<1x128xf32, #tpu.memory_space<vmem>>, vector<1x128xf32>
    %59 = vector.broadcast %58 : vector<1x128xf32> to vector<256x128xf32>
    %60 = arith.mulf %57, %59 : vector<256x128xf32>
    %c0_26 = arith.constant 0 : index
    %c0_27 = arith.constant 0 : index
    %61 = vector.load %arg6[%c0_26, %c0_27] : memref<1x128xf32, #tpu.memory_space<vmem>>, vector<1x128xf32>
    %62 = vector.broadcast %61 : vector<1x128xf32> to vector<256x128xf32>
    %63 = arith.addf %60, %62 : vector<256x128xf32>
    %cst_28 = arith.constant 0.000000e+00 : f32
    %64 = vector.broadcast %cst_28 : f32 to vector<256x128xf32>
    %65 = arith.maximumf %63, %64 : vector<256x128xf32>
    %66 = arith.truncf %65 : vector<256x128xf32> to vector<256x128xbf16>
    %c0_29 = arith.constant 0 : index
    %c0_30 = arith.constant 0 : index
    %67 = vector.load %arg7[%c0_29, %c0_30] : memref<128x128xbf16, #tpu.memory_space<vmem>>, vector<128x128xbf16>
    %cst_31 = arith.constant dense<0.000000e+00> : vector<256x128xf32>
    %68 = tpu.matmul %66, %67, %cst_31 {dimension_numbers = #tpu.dot_dimension_numbers<[1], [0], [0], [1], [0, 0, 1, 1], [], []>} : vector<256x128xbf16>, vector<128x128xbf16>, vector<256x128xf32> -> vector<256x128xf32>
    %cst_32 = arith.constant 1.000000e+00 : f32
    %69 = vector.broadcast %cst_32 : f32 to vector<256x128xf32>
    %70 = arith.mulf %68, %69 : vector<256x128xf32>
    %c0_33 = arith.constant 0 : index
    %c0_34 = arith.constant 0 : index
    %71 = vector.load %arg8[%c0_33, %c0_34] : memref<256x128xf32, #tpu.memory_space<vmem>>, vector<256x128xf32>
    tpu.vector_store %arg8[%c0_33, %c0_34], %70 {strides = array<i32>} : memref<256x128xf32, #tpu.memory_space<vmem>>, vector<256x128xf32>,
    return
  }
}

</mosaic_0001>

<llo_original>
// kernel: tpu_custom_call.1
$region0: #{tpu_custom_call.1}
  #allocation0 [shape = 'u32[]', space=smem, size = 0x4, offset = 0x4, fixed_abs, tag = 'smem constant byte address 0x4 - core index']
  #allocation1 [shape = 'u32[144,128]{1,0:T(1,128)}', space=vmem, size = 0x12000, scoped, tag = 'internal scratch']
  %s0 = inlined_call_operand.vmem [shape: f32[256,72], index: 0, kind: input, shape index: {}]
  %s1 = inlined_call_operand.vmem [shape: f32[72,128], index: 1, kind: input, shape index: {}]
  %s2 = inlined_call_operand.vmem [shape: f32[1,128], index: 2, kind: input, shape index: {}]
  %s3 = inlined_call_operand.vmem [shape: f32[1,128], index: 3, kind: input, shape index: {}]
  %s4 = inlined_call_operand.vmem [shape: bf16[128,128], index: 4, kind: input, shape index: {}]
  %s5 = inlined_call_operand.vmem [shape: f32[1,128], index: 5, kind: input, shape index: {}]
  %s6 = inlined_call_operand.vmem [shape: f32[1,128], index: 6, kind: input, shape index: {}]
  %s7 = inlined_call_operand.vmem [shape: bf16[128,128], index: 7, kind: input, shape index: {}]
  %s8 = inlined_call_operand.hbm [shape: f32[256,128], index: 8, kind: output, shape index: {}]
  %s9 = sld [smem:[#allocation0]]
  $region42: #{tpu_custom_call.1} parent=0
    _
  %s11 = ssub.s32 1, %s9
  %s12 = scalar_select 0, %s11, %s9
  $region1: #{tpu_custom_call.1} parent=0
    #allocation2 [shape = 'u8[131072]{0}', space=vmem, size = 0x20000, scoped, tag = 'output window, operand 0, single buffered']
    #allocation3 [shape = 's32[1]{0}', space=sflag, size = 0x4, scoped, tag = 'scoped memory for tpu_custom_call.1']
    %13 = vsyncpa [#allocation3], 0
    // Predicated region
    $region2: #{tpu_custom_call.1} parent=1 // pred_check
      _
    $region3: #{tpu_custom_call.1} parent=1 // pred_check_branch
      %15 = sbr.rel (0) target = $region5
    $region4: #{tpu_custom_call.1} parent=1 // pred_region
      _
    $region5: #{tpu_custom_call.1} parent=1 // pred_fallthru
      _
    // Predicated region
    $region6: #{tpu_custom_call.1} parent=1 // pred_check
      _
    $region7: #{tpu_custom_call.1} parent=1 // pred_check_branch
      %17 = sbr.rel (0) target = $region9
    $region8: #{tpu_custom_call.1} parent=1 // pred_region
      _
    $region9: #{tpu_custom_call.1} parent=1 // pred_fallthru
      _
    // Predicated region
    $region10: #{tpu_custom_call.1} parent=1 // pred_check
      _
    $region11: #{tpu_custom_call.1} parent=1 // pred_check_branch
      %19 = sbr.rel (0) target = $region13
    $region12: #{tpu_custom_call.1} parent=1 // pred_region
      _
    $region13: #{tpu_custom_call.1} parent=1 // pred_fallthru
      _
    // Predicated region
    $region14: #{tpu_custom_call.1} parent=1 // pred_check
      _
    $region15: #{tpu_custom_call.1} parent=1 // pred_check_branch
      %21 = sbr.rel (0) target = $region17
    $region16: #{tpu_custom_call.1} parent=1 // pred_region
      _
    $region17: #{tpu_custom_call.1} parent=1 // pred_fallthru
      _
    // Predicated region
    $region18: #{tpu_custom_call.1} parent=1 // pred_check
      _
    $region19: #{tpu_custom_call.1} parent=1 // pred_check_branch
      %23 = sbr.rel (0) target = $region21
    $region20: #{tpu_custom_call.1} parent=1 // pred_region
      _
    $region21: #{tpu_custom_call.1} parent=1 // pred_fallthru
      _
    // Predicated region
    $region22: #{tpu_custom_call.1} parent=1 // pred_check
      _
    $region23: #{tpu_custom_call.1} parent=1 // pred_check_branch
      %25 = sbr.rel (0) target = $region25
    $region24: #{tpu_custom_call.1} parent=1 // pred_region
      _
    $region25: #{tpu_custom_call.1} parent=1 // pred_fallthru
      _
    // Predicated region
    $region26: #{tpu_custom_call.1} parent=1 // pred_check
      _
    $region27: #{tpu_custom_call.1} parent=1 // pred_check_branch
      %27 = sbr.rel (0) target = $region29
    $region28: #{tpu_custom_call.1} parent=1 // pred_region
      _
    $region29: #{tpu_custom_call.1} parent=1 // pred_fallthru
      _
    // Predicated region
    $region30: #{tpu_custom_call.1} parent=1 // pred_check
      _
    $region31: #{tpu_custom_call.1} parent=1 // pred_check_branch
      %29 = sbr.rel (0) target = $region33
    $region32: #{tpu_custom_call.1} parent=1 // pred_region
      _
    $region33: #{tpu_custom_call.1} parent=1 // pred_fallthru
      _
    %v31 = vld [vmem:[%s0] sm:$0xff]
    %v32 = vld [vmem:[%s0 + $0x8] sm:$0xff]
    %v33 = vld [vmem:[%s0 + $0x10] sm:$0xff]
    %v34 = vld [vmem:[%s0 + $0x18] sm:$0xff]
    %v35 = vld [vmem:[%s0 + $0x20] sm:$0xff]
    %v36 = vld [vmem:[%s0 + $0x28] sm:$0xff]
    %v37 = vld [vmem:[%s0 + $0x30] sm:$0xff]
    %v38 = vld [vmem:[%s0 + $0x38] sm:$0xff]
    %v39 = vld [vmem:[%s0 + $0x40] sm:$0xff]
    %v40 = vld [vmem:[%s0 + $0x48] sm:$0xff]
    %v41 = vld [vmem:[%s0 + $0x50] sm:$0xff]
    %v42 = vld [vmem:[%s0 + $0x58] sm:$0xff]
    %v43 = vld [vmem:[%s0 + $0x60] sm:$0xff]
    %v44 = vld [vmem:[%s0 + $0x68] sm:$0xff]
    %v45 = vld [vmem:[%s0 + $0x70] sm:$0xff]
    %v46 = vld [vmem:[%s0 + $0x78] sm:$0xff]
    %v47 = vld [vmem:[%s0 + $0x80] sm:$0xff]
    %v48 = vld [vmem:[%s0 + $0x88] sm:$0xff]
    %v49 = vld [vmem:[%s0 + $0x90] sm:$0xff]
    %v50 = vld [vmem:[%s0 + $0x98] sm:$0xff]
    %v51 = vld [vmem:[%s0 + $0xa0] sm:$0xff]
    %v52 = vld [vmem:[%s0 + $0xa8] sm:$0xff]
    %v53 = vld [vmem:[%s0 + $0xb0] sm:$0xff]
    %v54 = vld [vmem:[%s0 + $0xb8] sm:$0xff]
    %v55 = vld [vmem:[%s0 + $0xc0] sm:$0xff]
    %v56 = vld [vmem:[%s0 + $0xc8] sm:$0xff]
    %v57 = vld [vmem:[%s0 + $0xd0] sm:$0xff]
    %v58 = vld [vmem:[%s0 + $0xd8] sm:$0xff]
    %v59 = vld [vmem:[%s0 + $0xe0] sm:$0xff]
    %v60 = vld [vmem:[%s0 + $0xe8] sm:$0xff]
    %v61 = vld [vmem:[%s0 + $0xf0] sm:$0xff]
    %v62 = vld [vmem:[%s0 + $0xf8] sm:$0xff]
    %v63 = vld [vmem:[%s1] sm:$0xff]
    %v64 = vld [vmem:[%s1 + $0x8] sm:$0xff]
    %v65 = vld [vmem:[%s1 + $0x10] sm:$0xff]
    %v66 = vld [vmem:[%s1 + $0x18] sm:$0xff]
    %v67 = vld [vmem:[%s1 + $0x20] sm:$0xff]
    %v68 = vld [vmem:[%s1 + $0x28] sm:$0xff]
    %v69 = vld [vmem:[%s1 + $0x30] sm:$0xff]
    %v70 = vld [vmem:[%s1 + $0x38] sm:$0xff]
    %v71 = vld [vmem:[%s1 + $0x40] sm:$0xff]
    %vm72 = vcmask 588800
    %v74 = vsel %vm72, %v31, 0
    %v77 = vsel %vm72, %v32, 0
    %v80 = vsel %vm72, %v33, 0
    %v83 = vsel %vm72, %v34, 0
    %v86 = vsel %vm72, %v35, 0
    %v89 = vsel %vm72, %v36, 0
    %v92 = vsel %vm72, %v37, 0
    %v95 = vsel %vm72, %v38, 0
    %v98 = vsel %vm72, %v39, 0
    %v101 = vsel %vm72, %v40, 0
    %v104 = vsel %vm72, %v41, 0
    %v107 = vsel %vm72, %v42, 0
    %v110 = vsel %vm72, %v43, 0
    %v113 = vsel %vm72, %v44, 0
    %v116 = vsel %vm72, %v45, 0
    %v119 = vsel %vm72, %v46, 0
    %v122 = vsel %vm72, %v47, 0
    %v125 = vsel %vm72, %v48, 0
    %v128 = vsel %vm72, %v49, 0
    %v131 = vsel %vm72, %v50, 0
    %v134 = vsel %vm72, %v51, 0
    %v137 = vsel %vm72, %v52, 0
    %v140 = vsel %vm72, %v53, 0
    %v143 = vsel %vm72, %v54, 0
    %v146 = vsel %vm72, %v55, 0
    %v149 = vsel %vm72, %v56, 0
    %v152 = vsel %vm72, %v57, 0
    %v155 = vsel %vm72, %v58, 0
    %v158 = vsel %vm72, %v59, 0
    %v161 = vsel %vm72, %v60, 0
    %v164 = vsel %vm72, %v61, 0
    %v167 = vsel %vm72, %v62, 0
    %169 = vmatprep.subr.mxu0 0.0
    %170 = vmatpush1.msra.mxu0 0.0
    %171 = vmatprep.subr.mxu0 0.0
    %172 = vmatpush1.msra.mxu0 0.0
    %173 = vmatprep.subr.mxu0 0.0
    %174 = vmatpush1.msra.mxu0 0.0
    %175 = vmatprep.subr.mxu0 0.0
    %176 = vmatpush1.msra.mxu0 0.0
    %177 = vmatprep.subr.mxu0 0.0
    %178 = vmatpush1.msra.mxu0 0.0
    %179 = vmatprep.subr.mxu0 0.0
    %180 = vmatpush1.msra.mxu0 0.0
    %181 = vmatprep.subr.mxu0 0.0
    %182 = vmatpush1.msra.mxu0 0.0
    %183 = vmatprep.subr.mxu0 0.0
    %184 = vmatpush1.msra.mxu0 %v71
    %185 = vmatprep.subr.mxu0 0.0
    %186 = vmatpush1.msra.mxu0 %v70
    %187 = vmatprep.subr.mxu0 0.0
    %188 = vmatpush1.msra.mxu0 %v69
    %189 = vmatprep.subr.mxu0 0.0
    %190 = vmatpush1.msra.mxu0 %v68
    %191 = vmatprep.subr.mxu0 0.0
    %192 = vmatpush1.msra.mxu0 %v67
    %193 = vmatprep.subr.mxu0 0.0
    %194 = vmatpush1.msra.mxu0 %v66
    %195 = vmatprep.subr.mxu0 0.0
    %196 = vmatpush1.msra.mxu0 %v65
    %197 = vmatprep.subr.mxu0 0.0
    %198 = vmatpush1.msra.mxu0 %v64
    %199 = vmatprep.subr.mxu0 0.0
    %200 = vmatpush1.msra.mxu0 %v63
    %201 = vmatprep.subr.mxu0 0.0
    %202 = vmatpush2.msra.mxu0 0.0
    %203 = vmatprep.subr.mxu0 0.0
    %204 = vmatpush2.msra.mxu0 0.0
    %205 = vmatprep.subr.mxu0 0.0
    %206 = vmatpush2.msra.mxu0 0.0
    %207 = vmatprep.subr.mxu0 0.0
    %208 = vmatpush2.msra.mxu0 0.0
    %209 = vmatprep.subr.mxu0 0.0
    %210 = vmatpush2.msra.mxu0 0.0
    %211 = vmatprep.subr.mxu0 0.0
    %212 = vmatpush2.msra.mxu0 0.0
    %213 = vmatprep.subr.mxu0 0.0
    %214 = vmatpush2.msra.mxu0 0.0
    %215 = vmatprep.subr.mxu0 0.0
    %216 = vmatpush2.msra.mxu0 0.0
    %217 = vmatprep.subr.mxu0 0.0
    %218 = vmatpush2.msra.mxu0 0.0
    %219 = vmatprep.subr.mxu0 0.0
    %220 = vmatpush2.msra.mxu0 0.0
    %221 = vmatprep.subr.mxu0 0.0
    %222 = vmatpush2.msra.mxu0 0.0
    %223 = vmatprep.subr.mxu0 0.0
    %224 = vmatpush2.msra.mxu0 0.0
    %225 = vmatprep.subr.mxu0 0.0
    %226 = vmatpush2.msra.mxu0 0.0
    %227 = vmatprep.subr.mxu0 0.0
    %228 = vmatpush2.msra.mxu0 0.0
    %229 = vmatprep.subr.mxu0 0.0
    %230 = vmatpush2.msra.mxu0 0.0
    %231 = vmatprep.subr.mxu0 0.0
    %232 = vmatpush2.msra.mxu0 0.0
    %233 = vmatprep.mubr.f32.mxu0 0.0
    %234 = vmatmul.mubr.f32.gmra.mxu0 %v74
    %v235 = vpop.f32.mrf.mxu0
    %v236 = vadd.f32 0.0, %v235
    %v237 = vpop.f32.mrf.mxu0
    %238 = vmatprep.mubr.f32.mxu0 0.0
    %239 = vmatmul.mubr.f32.gmra.mxu0 %v77
    %v240 = vpop.f32.mrf.mxu0
    %v241 = vadd.f32 0.0, %v240
    %v242 = vpop.f32.mrf.mxu0
    %243 = vmatprep.mubr.f32.mxu0 0.0
    %244 = vmatmul.mubr.f32.gmra.mxu0 %v80
    %v245 = vpop.f32.mrf.mxu0
    %v246 = vadd.f32 0.0, %v245
    %v247 = vpop.f32.mrf.mxu0
    %248 = vmatprep.mubr.f32.mxu0 0.0
    %249 = vmatmul.mubr.f32.gmra.mxu0 %v83
    %v250 = vpop.f32.mrf.mxu0
    %v251 = vadd.f32 0.0, %v250
    %v252 = vpop.f32.mrf.mxu0
    %253 = vmatprep.mubr.f32.mxu0 0.0
    %254 = vmatmul.mubr.f32.gmra.mxu0 %v86
    %v255 = vpop.f32.mrf.mxu0
    %v256 = vadd.f32 0.0, %v255
    %v257 = vpop.f32.mrf.mxu0
    %258 = vmatprep.mubr.f32.mxu0 0.0
    %259 = vmatmul.mubr.f32.gmra.mxu0 %v89
    %v260 = vpop.f32.mrf.mxu0
    %v261 = vadd.f32 0.0, %v260
    %v262 = vpop.f32.mrf.mxu0
    %263 = vmatprep.mubr.f32.mxu0 0.0
    %264 = vmatmul.mubr.f32.gmra.mxu0 %v92
    %v265 = vpop.f32.mrf.mxu0
    %v266 = vadd.f32 0.0, %v265
    %v267 = vpop.f32.mrf.mxu0
    %268 = vmatprep.mubr.f32.mxu0 0.0
    %269 = vmatmul.mubr.f32.gmra.mxu0 %v95
    %v270 = vpop.f32.mrf.mxu0
    %v271 = vadd.f32 0.0, %v270
    %v272 = vpop.f32.mrf.mxu0
    %273 = vmatprep.mubr.f32.mxu0 0.0
    %274 = vmatmul.mubr.f32.gmra.mxu0 %v98
    %v275 = vpop.f32.mrf.mxu0
    %v276 = vadd.f32 0.0, %v275
    %v277 = vpop.f32.mrf.mxu0
    %278 = vmatprep.mubr.f32.mxu0 0.0
    %279 = vmatmul.mubr.f32.gmra.mxu0 %v101
    %v280 = vpop.f32.mrf.mxu0
    %v281 = vadd.f32 0.0, %v280
    %v282 = vpop.f32.mrf.mxu0
    %283 = vmatprep.mubr.f32.mxu0 0.0
    %284 = vmatmul.mubr.f32.gmra.mxu0 %v104
    %v285 = vpop.f32.mrf.mxu0
    %v286 = vadd.f32 0.0, %v285
    %v287 = vpop.f32.mrf.mxu0
    %288 = vmatprep.mubr.f32.mxu0 0.0
    %289 = vmatmul.mubr.f32.gmra.mxu0 %v107
    %v290 = vpop.f32.mrf.mxu0
    %v291 = vadd.f32 0.0, %v290
    %v292 = vpop.f32.mrf.mxu0
    %293 = vmatprep.mubr.f32.mxu0 0.0
    %294 = vmatmul.mubr.f32.gmra.mxu0 %v110
    %v295 = vpop.f32.mrf.mxu0
    %v296 = vadd.f32 0.0, %v295
    %v297 = vpop.f32.mrf.mxu0
    %298 = vmatprep.mubr.f32.mxu0 0.0
    %299 = vmatmul.mubr.f32.gmra.mxu0 %v113
    %v300 = vpop.f32.mrf.mxu0
    %v301 = vadd.f32 0.0, %v300
    %v302 = vpop.f32.mrf.mxu0
    %303 = vmatprep.mubr.f32.mxu0 0.0
    %304 = vmatmul.mubr.f32.gmra.mxu0 %v116
    %v305 = vpop.f32.mrf.mxu0
    %v306 = vadd.f32 0.0, %v305
    %v307 = vpop.f32.mrf.mxu0
    %308 = vmatprep.mubr.f32.mxu0 0.0
    %309 = vmatmul.mubr.f32.gmra.mxu0 %v119
    %v310 = vpop.f32.mrf.mxu0
    %v311 = vadd.f32 0.0, %v310
    %v312 = vpop.f32.mrf.mxu0
    %313 = vmatprep.mubr.f32.mxu0 0.0
    %314 = vmatmul.mubr.f32.gmra.mxu0 %v122
    %v315 = vpop.f32.mrf.mxu0
    %v316 = vadd.f32 0.0, %v315
    %v317 = vpop.f32.mrf.mxu0
    %318 = vmatprep.mubr.f32.mxu0 0.0
    %319 = vmatmul.mubr.f32.gmra.mxu0 %v125
    %v320 = vpop.f32.mrf.mxu0
    %v321 = vadd.f32 0.0, %v320
    %v322 = vpop.f32.mrf.mxu0
    %323 = vmatprep.mubr.f32.mxu0 0.0
    %324 = vmatmul.mubr.f32.gmra.mxu0 %v128
    %v325 = vpop.f32.mrf.mxu0
    %v326 = vadd.f32 0.0, %v325
    %v327 = vpop.f32.mrf.mxu0
    %328 = vmatprep.mubr.f32.mxu0 0.0
    %329 = vmatmul.mubr.f32.gmra.mxu0 %v131
    %v330 = vpop.f32.mrf.mxu0
    %v331 = vadd.f32 0.0, %v330
    %v332 = vpop.f32.mrf.mxu0
    %333 = vmatprep.mubr.f32.mxu0 0.0
    %334 = vmatmul.mubr.f32.gmra.mxu0 %v134
    %v335 = vpop.f32.mrf.mxu0
    %v336 = vadd.f32 0.0, %v335
    %v337 = vpop.f32.mrf.mxu0
    %338 = vmatprep.mubr.f32.mxu0 0.0
    %339 = vmatmul.mubr.f32.gmra.mxu0 %v137
    %v340 = vpop.f32.mrf.mxu0
    %v341 = vadd.f32 0.0, %v340
    %v342 = vpop.f32.mrf.mxu0
    %343 = vmatprep.mubr.f32.mxu0 0.0
    %344 = vmatmul.mubr.f32.gmra.mxu0 %v140
    %v345 = vpop.f32.mrf.mxu0
    %v346 = vadd.f32 0.0, %v345
    %v347 = vpop.f32.mrf.mxu0
    %348 = vmatprep.mubr.f32.mxu0 0.0
    %349 = vmatmul.mubr.f32.gmra.mxu0 %v143
    %v350 = vpop.f32.mrf.mxu0
    %v351 = vadd.f32 0.0, %v350
    %v352 = vpop.f32.mrf.mxu0
    %353 = vmatprep.mubr.f32.mxu0 0.0
    %354 = vmatmul.mubr.f32.gmra.mxu0 %v146
    %v355 = vpop.f32.mrf.mxu0
    %v356 = vadd.f32 0.0, %v355
    %v357 = vpop.f32.mrf.mxu0
    %358 = vmatprep.mubr.f32.mxu0 0.0
    %359 = vmatmul.mubr.f32.gmra.mxu0 %v149
    %v360 = vpop.f32.mrf.mxu0
    %v361 = vadd.f32 0.0, %v360
    %v362 = vpop.f32.mrf.mxu0
    %363 = vmatprep.mubr.f32.mxu0 0.0
    %364 = vmatmul.mubr.f32.gmra.mxu0 %v152
    %v365 = vpop.f32.mrf.mxu0
    %v366 = vadd.f32 0.0, %v365
    %v367 = vpop.f32.mrf.mxu0
    %368 = vmatprep.mubr.f32.mxu0 0.0
    %369 = vmatmul.mubr.f32.gmra.mxu0 %v155
    %v370 = vpop.f32.mrf.mxu0
    %v371 = vadd.f32 0.0, %v370
    %v372 = vpop.f32.mrf.mxu0
    %373 = vmatprep.mubr.f32.mxu0 0.0
    %374 = vmatmul.mubr.f32.gmra.mxu0 %v158
    %v375 = vpop.f32.mrf.mxu0
    %v376 = vadd.f32 0.0, %v375
    %v377 = vpop.f32.mrf.mxu0
    %378 = vmatprep.mubr.f32.mxu0 0.0
    %379 = vmatmul.mubr.f32.gmra.mxu0 %v161
    %v380 = vpop.f32.mrf.mxu0
    %v381 = vadd.f32 0.0, %v380
    %v382 = vpop.f32.mrf.mxu0
    %383 = vmatprep.mubr.f32.mxu0 0.0
    %384 = vmatmul.mubr.f32.gmra.mxu0 %v164
    %v385 = vpop.f32.mrf.mxu0
    %v386 = vadd.f32 0.0, %v385
    %v387 = vpop.f32.mrf.mxu0
    %388 = vmatprep.mubr.f32.mxu0 0.0
    %389 = vmatmul.mubr.f32.gmra.mxu0 %v167
    %v390 = vpop.f32.mrf.mxu0
    %v391 = vadd.f32 0.0, %v390
    %v392 = vpop.f32.mrf.mxu0
    %393 = vdwg.mxu0
    %v394 = vadd.f32 %v236, %v241
    %v395 = vadd.f32 %v394, %v246
    %v396 = vadd.f32 %v395, %v251
    %v397 = vadd.f32 %v396, %v256
    %v398 = vadd.f32 %v397, %v261
    %v399 = vadd.f32 %v398, %v266
    %v400 = vadd.f32 %v399, %v271
    %v401 = vadd.f32 %v400, %v276
    %v402 = vadd.f32 %v401, %v281
    %v403 = vadd.f32 %v402, %v286
    %v404 = vadd.f32 %v403, %v291
    %v405 = vadd.f32 %v404, %v296
    %v406 = vadd.f32 %v405, %v301
    %v407 = vadd.f32 %v406, %v306
    %v408 = vadd.f32 %v407, %v311
    %v409 = vadd.f32 %v408, %v316
    %v410 = vadd.f32 %v409, %v321
    %v411 = vadd.f32 %v410, %v326
    %v412 = vadd.f32 %v411, %v331
    %v413 = vadd.f32 %v412, %v336
    %v414 = vadd.f32 %v413, %v341
    %v415 = vadd.f32 %v414, %v346
    %v416 = vadd.f32 %v415, %v351
    %v417 = vadd.f32 %v416, %v356
    %v418 = vadd.f32 %v417, %v361
    %v419 = vadd.f32 %v418, %v366
    %v420 = vadd.f32 %v419, %v371
    %v421 = vadd.f32 %v420, %v376
    %v422 = vadd.f32 %v421, %v381
    %v423 = vadd.f32 %v422, %v386
    %v424 = vadd.f32 %v423, %v391
    %v425 = vrot.slane %v424, 4
    %v426 = vadd.f32 %v424, %v425
    %v427 = vrot.slane %v426, 2
    %v428 = vadd.f32 %v426, %v427
    %v429 = vrot.slane %v428, 1
    %v430 = vadd.f32 %v428, %v429
    %v431 = vmul.f32 %v236, %v236
    %v432 = vmul.f32 %v241, %v241
    %v433 = vmul.f32 %v246, %v246
    %v434 = vmul.f32 %v251, %v251
    %v435 = vmul.f32 %v256, %v256
    %v436 = vmul.f32 %v261, %v261
    %v437 = vmul.f32 %v266, %v266
    %v438 = vmul.f32 %v271, %v271
    %v439 = vmul.f32 %v276, %v276
    %v440 = vmul.f32 %v281, %v281
    %v441 = vmul.f32 %v286, %v286
    %v442 = vmul.f32 %v291, %v291
    %v443 = vmul.f32 %v296, %v296
    %v444 = vmul.f32 %v301, %v301
    %v445 = vmul.f32 %v306, %v306
    %v446 = vmul.f32 %v311, %v311
    %v447 = vmul.f32 %v316, %v316
    %v448 = vmul.f32 %v321, %v321
    %v449 = vmul.f32 %v326, %v326
    %v450 = vmul.f32 %v331, %v331
    %v451 = vmul.f32 %v336, %v336
    %v452 = vmul.f32 %v341, %v341
    %v453 = vmul.f32 %v346, %v346
    %v454 = vmul.f32 %v351, %v351
    %v455 = vmul.f32 %v356, %v356
    %v456 = vmul.f32 %v361, %v361
    %v457 = vmul.f32 %v366, %v366
    %v458 = vmul.f32 %v371, %v371
    %v459 = vmul.f32 %v376, %v376
    %v460 = vmul.f32 %v381, %v381
    %v461 = vmul.f32 %v386, %v386
    %v462 = vmul.f32 %v391, %v391
    %v463 = vadd.f32 %v431, %v432
    %v464 = vadd.f32 %v463, %v433
    %v465 = vadd.f32 %v464, %v434
    %v466 = vadd.f32 %v465, %v435
    %v467 = vadd.f32 %v466, %v436
    %v468 = vadd.f32 %v467, %v437
    %v469 = vadd.f32 %v468, %v438
    %v470 = vadd.f32 %v469, %v439
    %v471 = vadd.f32 %v470, %v440
    %v472 = vadd.f32 %v471, %v441
    %v473 = vadd.f32 %v472, %v442
    %v474 = vadd.f32 %v473, %v443
    %v475 = vadd.f32 %v474, %v444
    %v476 = vadd.f32 %v475, %v445
    %v477 = vadd.f32 %v476, %v446
    %v478 = vadd.f32 %v477, %v447
    %v479 = vadd.f32 %v478, %v448
    %v480 = vadd.f32 %v479, %v449
    %v481 = vadd.f32 %v480, %v450
    %v482 = vadd.f32 %v481, %v451
    %v483 = vadd.f32 %v482, %v452
    %v484 = vadd.f32 %v483, %v453
    %v485 = vadd.f32 %v484, %v454
    %v486 = vadd.f32 %v485, %v455
    %v487 = vadd.f32 %v486, %v456
    %v488 = vadd.f32 %v487, %v457
    %v489 = vadd.f32 %v488, %v458
    %v490 = vadd.f32 %v489, %v459
    %v491 = vadd.f32 %v490, %v460
    %v492 = vadd.f32 %v491, %v461
    %v493 = vadd.f32 %v492, %v462
    %v494 = vrot.slane %v493, 4
    %v495 = vadd.f32 %v493, %v494
    %v496 = vrot.slane %v495, 2
    %v497 = vadd.f32 %v495, %v496
    %v498 = vrot.slane %v497, 1
    %v499 = vadd.f32 %v497, %v498
    %500 = vrot.lane.b32.xlu0 %v430, 64
    %v501 = vpop.permute.xlu0 %500
    %v502 = vadd.f32 %v430, %v501
    %503 = vrot.lane.b32.xlu0 %v499, 64
    %v504 = vpop.permute.xlu0 %503
    %v505 = vadd.f32 %v499, %v504
    %v506 = vmul.f32 %v502, 0.001953125
    %v507 = vmul.f32 %v505, 0.001953125
    %v508 = vmul.f32 %v506, %v506
    %v509 = vsub.f32 %v507, %v508
    %v510 = vlaneseq
    %v511 = vshrl.u32 %v510, 7
    %v512 = vsub.s32 0, %v511
    %v513 = vrot.slane %v506, %v512
    %v514 = vsub.f32 %v236, %v513
    %v515 = vsub.f32 %v241, %v513
    %v516 = vsub.f32 %v246, %v513
    %v517 = vsub.f32 %v251, %v513
    %v518 = vsub.f32 %v256, %v513
    %v519 = vsub.f32 %v261, %v513
    %v520 = vsub.f32 %v266, %v513
    %v521 = vsub.f32 %v271, %v513
    %v522 = vsub.f32 %v276, %v513
    %v523 = vsub.f32 %v281, %v513
    %v524 = vsub.f32 %v286, %v513
    %v525 = vsub.f32 %v291, %v513
    %v526 = vsub.f32 %v296, %v513
    %v527 = vsub.f32 %v301, %v513
    %v528 = vsub.f32 %v306, %v513
    %v529 = vsub.f32 %v311, %v513
    %v530 = vsub.f32 %v316, %v513
    %v531 = vsub.f32 %v321, %v513
    %v532 = vsub.f32 %v326, %v513
    %v533 = vsub.f32 %v331, %v513
    %v534 = vsub.f32 %v336, %v513
    %v535 = vsub.f32 %v341, %v513
    %v536 = vsub.f32 %v346, %v513
    %v537 = vsub.f32 %v351, %v513
    %v538 = vsub.f32 %v356, %v513
    %v539 = vsub.f32 %v361, %v513
    %v540 = vsub.f32 %v366, %v513
    %v541 = vsub.f32 %v371, %v513
    %v542 = vsub.f32 %v376, %v513
    %v543 = vsub.f32 %v381, %v513
    %v544 = vsub.f32 %v386, %v513
    %v545 = vsub.f32 %v391, %v513
    %v546 = vadd.f32 %v509, 1e-05
    %v547 = vrsqrt.pop %v546
    %v548 = vlaneseq
    %v549 = vshrl.u32 %v548, 7
    %v550 = vsub.s32 0, %v549
    %v551 = vrot.slane %v547, %v550
    %v552 = vmul.f32 %v514, %v551
    %v553 = vmul.f32 %v515, %v551
    %v554 = vmul.f32 %v516, %v551
    %v555 = vmul.f32 %v517, %v551
    %v556 = vmul.f32 %v518, %v551
    %v557 = vmul.f32 %v519, %v551
    %v558 = vmul.f32 %v520, %v551
    %v559 = vmul.f32 %v521, %v551
    %v560 = vmul.f32 %v522, %v551
    %v561 = vmul.f32 %v523, %v551
    %v562 = vmul.f32 %v524, %v551
    %v563 = vmul.f32 %v525, %v551
    %v564 = vmul.f32 %v526, %v551
    %v565 = vmul.f32 %v527, %v551
    %v566 = vmul.f32 %v528, %v551
    %v567 = vmul.f32 %v529, %v551
    %v568 = vmul.f32 %v530, %v551
    %v569 = vmul.f32 %v531, %v551
    %v570 = vmul.f32 %v532, %v551
    %v571 = vmul.f32 %v533, %v551
    %v572 = vmul.f32 %v534, %v551
    %v573 = vmul.f32 %v535, %v551
    %v574 = vmul.f32 %v536, %v551
    %v575 = vmul.f32 %v537, %v551
    %v576 = vmul.f32 %v538, %v551
    %v577 = vmul.f32 %v539, %v551
    %v578 = vmul.f32 %v540, %v551
    %v579 = vmul.f32 %v541, %v551
    %v580 = vmul.f32 %v542, %v551
    %v581 = vmul.f32 %v543, %v551
    %v582 = vmul.f32 %v544, %v551
    %v583 = vmul.f32 %v545, %v551
    %v584 = vld [vmem:[%s2] sm:$0x1]
    %v586 = vlaneseq
    %v587 = vshrl.u32 %v586, 7
    %v588 = vsub.s32 0, %v587
    %v589 = vrot.slane %v584, %v588
    %v591 = vmul.f32 %v552, %v589
    %v592 = vmul.f32 %v553, %v589
    %v593 = vmul.f32 %v554, %v589
    %v594 = vmul.f32 %v555, %v589
    %v595 = vmul.f32 %v556, %v589
    %v596 = vmul.f32 %v557, %v589
    %v597 = vmul.f32 %v558, %v589
    %v598 = vmul.f32 %v559, %v589
    %v599 = vmul.f32 %v560, %v589
    %v600 = vmul.f32 %v561, %v589
    %v601 = vmul.f32 %v562, %v589
    %v602 = vmul.f32 %v563, %v589
    %v603 = vmul.f32 %v564, %v589
    %v604 = vmul.f32 %v565, %v589
    %v605 = vmul.f32 %v566, %v589
    %v606 = vmul.f32 %v567, %v589
    %v607 = vmul.f32 %v568, %v589
    %v608 = vmul.f32 %v569, %v589
    %v609 = vmul.f32 %v570, %v589
    %v610 = vmul.f32 %v571, %v589
    %v611 = vmul.f32 %v572, %v589
    %v612 = vmul.f32 %v573, %v589
    %v613 = vmul.f32 %v574, %v589
    %v614 = vmul.f32 %v575, %v589
    %v615 = vmul.f32 %v576, %v589
    %v616 = vmul.f32 %v577, %v589
    %v617 = vmul.f32 %v578, %v589
    %v618 = vmul.f32 %v579, %v589
    %v619 = vmul.f32 %v580, %v589
    %v620 = vmul.f32 %v581, %v589
    %v621 = vmul.f32 %v582, %v589
    %v622 = vmul.f32 %v583, %v589
    %v623 = vld [vmem:[%s3] sm:$0x1]
    %v625 = vlaneseq
    %v626 = vshrl.u32 %v625, 7
    %v627 = vsub.s32 0, %v626
    %v628 = vrot.slane %v623, %v627
    %v630 = vadd.f32 %v591, %v628
    %v631 = vadd.f32 %v592, %v628
    %v632 = vadd.f32 %v593, %v628
    %v633 = vadd.f32 %v594, %v628
    %v634 = vadd.f32 %v595, %v628
    %v635 = vadd.f32 %v596, %v628
    %v636 = vadd.f32 %v597, %v628
    %v637 = vadd.f32 %v598, %v628
    %v638 = vadd.f32 %v599, %v628
    %v639 = vadd.f32 %v600, %v628
    %v640 = vadd.f32 %v601, %v628
    %v641 = vadd.f32 %v602, %v628
    %v642 = vadd.f32 %v603, %v628
    %v643 = vadd.f32 %v604, %v628
    %v644 = vadd.f32 %v605, %v628
    %v645 = vadd.f32 %v606, %v628
    %v646 = vadd.f32 %v607, %v628
    %v647 = vadd.f32 %v608, %v628
    %v648 = vadd.f32 %v609, %v628
    %v649 = vadd.f32 %v610, %v628
    %v650 = vadd.f32 %v611, %v628
    %v651 = vadd.f32 %v612, %v628
    %v652 = vadd.f32 %v613, %v628
    %v653 = vadd.f32 %v614, %v628
    %v654 = vadd.f32 %v615, %v628
    %v655 = vadd.f32 %v616, %v628
    %v656 = vadd.f32 %v617, %v628
    %v657 = vadd.f32 %v618, %v628
    %v658 = vadd.f32 %v619, %v628
    %v659 = vadd.f32 %v620, %v628
    %v660 = vadd.f32 %v621, %v628
    %v661 = vadd.f32 %v622, %v628
    %v662 = vmax.f32 %v630, 0.0
    %v663 = vmax.f32 %v631, 0.0
    %v664 = vmax.f32 %v632, 0.0
    %v665 = vmax.f32 %v633, 0.0
    %v666 = vmax.f32 %v634, 0.0
    %v667 = vmax.f32 %v635, 0.0
    %v668 = vmax.f32 %v636, 0.0
    %v669 = vmax.f32 %v637, 0.0
    %v670 = vmax.f32 %v638, 0.0
    %v671 = vmax.f32 %v639, 0.0
    %v672 = vmax.f32 %v640, 0.0
    %v673 = vmax.f32 %v641, 0.0
    %v674 = vmax.f32 %v642, 0.0
    %v675 = vmax.f32 %v643, 0.0
    %v676 = vmax.f32 %v644, 0.0
    %v677 = vmax.f32 %v645, 0.0
    %v678 = vmax.f32 %v646, 0.0
    %v679 = vmax.f32 %v647, 0.0
    %v680 = vmax.f32 %v648, 0.0
    %v681 = vmax.f32 %v649, 0.0
    %v682 = vmax.f32 %v650, 0.0
    %v683 = vmax.f32 %v651, 0.0
    %v684 = vmax.f32 %v652, 0.0
    %v685 = vmax.f32 %v653, 0.0
    %v686 = vmax.f32 %v654, 0.0
    %v687 = vmax.f32 %v655, 0.0
    %v688 = vmax.f32 %v656, 0.0
    %v689 = vmax.f32 %v657, 0.0
    %v690 = vmax.f32 %v658, 0.0
    %v691 = vmax.f32 %v659, 0.0
    %v692 = vmax.f32 %v660, 0.0
    %v693 = vmax.f32 %v661, 0.0
    %v694 = vpack.c.bf16 %v663, %v662
    %v695 = vpack.c.bf16 %v665, %v664
    %v696 = vpack.c.bf16 %v667, %v666
    %v697 = vpack.c.bf16 %v669, %v668
    %v698 = vpack.c.bf16 %v671, %v670
    %v699 = vpack.c.bf16 %v673, %v672
    %v700 = vpack.c.bf16 %v675, %v674
    %v701 = vpack.c.bf16 %v677, %v676
    %v702 = vpack.c.bf16 %v679, %v678
    %v703 = vpack.c.bf16 %v681, %v680
    %v704 = vpack.c.bf16 %v683, %v682
    %v705 = vpack.c.bf16 %v685, %v684
    %v706 = vpack.c.bf16 %v687, %v686
    %v707 = vpack.c.bf16 %v689, %v688
    %v708 = vpack.c.bf16 %v691, %v690
    %v709 = vpack.c.bf16 %v693, %v692
    %v710 = vld [vmem:[%s4] sm:$0xf]
    %v711 = vld [vmem:[%s4 + $0x4] sm:$0xf]
    %v712 = vld [vmem:[%s4 + $0x8] sm:$0xf]
    %v713 = vld [vmem:[%s4 + $0xc] sm:$0xf]
    %v714 = vld [vmem:[%s4 + $0x10] sm:$0xf]
    %v715 = vld [vmem:[%s4 + $0x14] sm:$0xf]
    %v716 = vld [vmem:[%s4 + $0x18] sm:$0xf]
    %v717 = vld [vmem:[%s4 + $0x1c] sm:$0xf]
    %v718 = vld [vmem:[%s4 + $0x20] sm:$0xf]
    %v719 = vld [vmem:[%s4 + $0x24] sm:$0xf]
    %v720 = vld [vmem:[%s4 + $0x28] sm:$0xf]
    %v721 = vld [vmem:[%s4 + $0x2c] sm:$0xf]
    %v722 = vld [vmem:[%s4 + $0x30] sm:$0xf]
    %v723 = vld [vmem:[%s4 + $0x34] sm:$0xf]
    %v724 = vld [vmem:[%s4 + $0x38] sm:$0xf]
    %v725 = vld [vmem:[%s4 + $0x3c] sm:$0xf]
    %v742 = vunpack.c.l.b16 %v710
    %v743 = vunpack.c.l.b16 %v711
    %v744 = vunpack.c.l.b16 %v712
    %v745 = vunpack.c.l.b16 %v713
    %v746 = vunpack.c.l.b16 %v714
    %v747 = vunpack.c.l.b16 %v715
    %v748 = vunpack.c.l.b16 %v716
    %v749 = vunpack.c.l.b16 %v717
    %v750 = vunpack.c.l.b16 %v718
    %v751 = vunpack.c.l.b16 %v719
    %v752 = vunpack.c.l.b16 %v720
    %v753 = vunpack.c.l.b16 %v721
    %v754 = vunpack.c.l.b16 %v722
    %v755 = vunpack.c.l.b16 %v723
    %v756 = vunpack.c.l.b16 %v724
    %v757 = vunpack.c.l.b16 %v725
    %v758 = vpack.c.b16 %v743, %v742
    %v759 = vpack.c.b16 %v745, %v744
    %v760 = vpack.c.b16 %v747, %v746
    %v761 = vpack.c.b16 %v749, %v748
    %v762 = vpack.c.b16 %v751, %v750
    %v763 = vpack.c.b16 %v753, %v752
    %v764 = vpack.c.b16 %v755, %v754
    %v765 = vpack.c.b16 %v757, %v756
    %774 = vmatprep.subr.bf16.mxu0 0
    %775 = vmatpush1.bf16.msra.mxu0 %v765
    %776 = vmatprep.subr.bf16.mxu0 0
    %777 = vmatpush1.bf16.msra.mxu0 %v764
    %778 = vmatprep.subr.bf16.mxu0 0
    %779 = vmatpush1.bf16.msra.mxu0 %v763
    %780 = vmatprep.subr.bf16.mxu0 0
    %781 = vmatpush1.bf16.msra.mxu0 %v762
    %782 = vmatprep.subr.bf16.mxu0 0
    %783 = vmatpush1.bf16.msra.mxu0 %v761
    %784 = vmatprep.subr.bf16.mxu0 0
    %785 = vmatpush1.bf16.msra.mxu0 %v760
    %786 = vmatprep.subr.bf16.mxu0 0
    %787 = vmatpush1.bf16.msra.mxu0 %v759
    %788 = vmatprep.subr.bf16.mxu0 0
    %789 = vmatpush1.bf16.msra.mxu0 %v758
    %790 = vmatprep.subr.bf16.mxu0 0
    %791 = vmatpush2.bf16.msra.mxu0 0
    %792 = vmatprep.subr.bf16.mxu0 0
    %793 = vmatpush2.bf16.msra.mxu0 0
    %794 = vmatprep.subr.bf16.mxu0 0
    %795 = vmatpush2.bf16.msra.mxu0 0
    %796 = vmatprep.subr.bf16.mxu0 0
    %797 = vmatpush2.bf16.msra.mxu0 0
    %798 = vmatprep.subr.bf16.mxu0 0
    %799 = vmatpush2.bf16.msra.mxu0 0
    %800 = vmatprep.subr.bf16.mxu0 0
    %801 = vmatpush2.bf16.msra.mxu0 0
    %802 = vmatprep.subr.bf16.mxu0 0
    %803 = vmatpush2.bf16.msra.mxu0 0
    %804 = vmatprep.subr.bf16.mxu0 0
    %805 = vmatpush2.bf16.msra.mxu0 0
    %806 = vmatprep.mubr.bf16.mxu0 0
    %807 = vmatmul.mubr.bf16.gmra.mxu0 %v694
    %v808 = vpop.f32.mrf.mxu0
    %v809 = vadd.f32 0.0, %v808
    %v810 = vpop.f32.mrf.mxu0
    %v811 = vpop.f32.mrf.mxu0
    %v812 = vadd.f32 0.0, %v811
    %v813 = vpop.f32.mrf.mxu0
    %814 = vmatprep.mubr.bf16.mxu0 0
    %815 = vmatmul.mubr.bf16.gmra.mxu0 %v695
    %v816 = vpop.f32.mrf.mxu0
    %v817 = vadd.f32 0.0, %v816
    %v818 = vpop.f32.mrf.mxu0
    %v819 = vpop.f32.mrf.mxu0
    %v820 = vadd.f32 0.0, %v819
    %v821 = vpop.f32.mrf.mxu0
    %822 = vmatprep.mubr.bf16.mxu0 0
    %823 = vmatmul.mubr.bf16.gmra.mxu0 %v696
    %v824 = vpop.f32.mrf.mxu0
    %v825 = vadd.f32 0.0, %v824
    %v826 = vpop.f32.mrf.mxu0
    %v827 = vpop.f32.mrf.mxu0
    %v828 = vadd.f32 0.0, %v827
    %v829 = vpop.f32.mrf.mxu0
    %830 = vmatprep.mubr.bf16.mxu0 0
    %831 = vmatmul.mubr.bf16.gmra.mxu0 %v697
    %v832 = vpop.f32.mrf.mxu0
    %v833 = vadd.f32 0.0, %v832
    %v834 = vpop.f32.mrf.mxu0
    %v835 = vpop.f32.mrf.mxu0
    %v836 = vadd.f32 0.0, %v835
    %v837 = vpop.f32.mrf.mxu0
    %838 = vmatprep.mubr.bf16.mxu0 0
    %839 = vmatmul.mubr.bf16.gmra.mxu0 %v698
    %v840 = vpop.f32.mrf.mxu0
    %v841 = vadd.f32 0.0, %v840
    %v842 = vpop.f32.mrf.mxu0
    %v843 = vpop.f32.mrf.mxu0
    %v844 = vadd.f32 0.0, %v843
    %v845 = vpop.f32.mrf.mxu0
    %846 = vmatprep.mubr.bf16.mxu0 0
    %847 = vmatmul.mubr.bf16.gmra.mxu0 %v699
    %v848 = vpop.f32.mrf.mxu0
    %v849 = vadd.f32 0.0, %v848
    %v850 = vpop.f32.mrf.mxu0
    %v851 = vpop.f32.mrf.mxu0
    %v852 = vadd.f32 0.0, %v851
    %v853 = vpop.f32.mrf.mxu0
    %854 = vmatprep.mubr.bf16.mxu0 0
    %855 = vmatmul.mubr.bf16.gmra.mxu0 %v700
    %v856 = vpop.f32.mrf.mxu0
    %v857 = vadd.f32 0.0, %v856
    %v858 = vpop.f32.mrf.mxu0
    %v859 = vpop.f32.mrf.mxu0
    %v860 = vadd.f32 0.0, %v859
    %v861 = vpop.f32.mrf.mxu0
    %862 = vmatprep.mubr.bf16.mxu0 0
    %863 = vmatmul.mubr.bf16.gmra.mxu0 %v701
    %v864 = vpop.f32.mrf.mxu0
    %v865 = vadd.f32 0.0, %v864
    %v866 = vpop.f32.mrf.mxu0
    %v867 = vpop.f32.mrf.mxu0
    %v868 = vadd.f32 0.0, %v867
    %v869 = vpop.f32.mrf.mxu0
    %870 = vmatprep.mubr.bf16.mxu0 0
    %871 = vmatmul.mubr.bf16.gmra.mxu0 %v702
    %v872 = vpop.f32.mrf.mxu0
    %v873 = vadd.f32 0.0, %v872
    %v874 = vpop.f32.mrf.mxu0
    %v875 = vpop.f32.mrf.mxu0
    %v876 = vadd.f32 0.0, %v875
    %v877 = vpop.f32.mrf.mxu0
    %878 = vmatprep.mubr.bf16.mxu0 0
    %879 = vmatmul.mubr.bf16.gmra.mxu0 %v703
    %v880 = vpop.f32.mrf.mxu0
    %v881 = vadd.f32 0.0, %v880
    %v882 = vpop.f32.mrf.mxu0
    %v883 = vpop.f32.mrf.mxu0
    %v884 = vadd.f32 0.0, %v883
    %v885 = vpop.f32.mrf.mxu0
    %886 = vmatprep.mubr.bf16.mxu0 0
    %887 = vmatmul.mubr.bf16.gmra.mxu0 %v704
    %v888 = vpop.f32.mrf.mxu0
    %v889 = vadd.f32 0.0, %v888
    %v890 = vpop.f32.mrf.mxu0
    %v891 = vpop.f32.mrf.mxu0
    %v892 = vadd.f32 0.0, %v891
    %v893 = vpop.f32.mrf.mxu0
    %894 = vmatprep.mubr.bf16.mxu0 0
    %895 = vmatmul.mubr.bf16.gmra.mxu0 %v705
    %v896 = vpop.f32.mrf.mxu0
    %v897 = vadd.f32 0.0, %v896
    %v898 = vpop.f32.mrf.mxu0
    %v899 = vpop.f32.mrf.mxu0
    %v900 = vadd.f32 0.0, %v899
    %v901 = vpop.f32.mrf.mxu0
    %902 = vmatprep.mubr.bf16.mxu0 0
    %903 = vmatmul.mubr.bf16.gmra.mxu0 %v706
    %v904 = vpop.f32.mrf.mxu0
    %v905 = vadd.f32 0.0, %v904
    %v906 = vpop.f32.mrf.mxu0
    %v907 = vpop.f32.mrf.mxu0
    %v908 = vadd.f32 0.0, %v907
    %v909 = vpop.f32.mrf.mxu0
    %910 = vmatprep.mubr.bf16.mxu0 0
    %911 = vmatmul.mubr.bf16.gmra.mxu0 %v707
    %v912 = vpop.f32.mrf.mxu0
    %v913 = vadd.f32 0.0, %v912
    %v914 = vpop.f32.mrf.mxu0
    %v915 = vpop.f32.mrf.mxu0
    %v916 = vadd.f32 0.0, %v915
    %v917 = vpop.f32.mrf.mxu0
    %918 = vmatprep.mubr.bf16.mxu0 0
    %919 = vmatmul.mubr.bf16.gmra.mxu0 %v708
    %v920 = vpop.f32.mrf.mxu0
    %v921 = vadd.f32 0.0, %v920
    %v922 = vpop.f32.mrf.mxu0
    %v923 = vpop.f32.mrf.mxu0
    %v924 = vadd.f32 0.0, %v923
    %v925 = vpop.f32.mrf.mxu0
    %926 = vmatprep.mubr.bf16.mxu0 0
    %927 = vmatmul.mubr.bf16.gmra.mxu0 %v709
    %v928 = vpop.f32.mrf.mxu0
    %v929 = vadd.f32 0.0, %v928
    %v930 = vpop.f32.mrf.mxu0
    %v931 = vpop.f32.mrf.mxu0
    %v932 = vadd.f32 0.0, %v931
    %v933 = vpop.f32.mrf.mxu0
    %934 = vdwg.mxu0
    %v935 = vadd.f32 %v809, %v812
    %v936 = vadd.f32 %v935, %v817
    %v937 = vadd.f32 %v936, %v820
    %v938 = vadd.f32 %v937, %v825
    %v939 = vadd.f32 %v938, %v828
    %v940 = vadd.f32 %v939, %v833
    %v941 = vadd.f32 %v940, %v836
    %v942 = vadd.f32 %v941, %v841
    %v943 = vadd.f32 %v942, %v844
    %v944 = vadd.f32 %v943, %v849
    %v945 = vadd.f32 %v944, %v852
    %v946 = vadd.f32 %v945, %v857
    %v947 = vadd.f32 %v946, %v860
    %v948 = vadd.f32 %v947, %v865
    %v949 = vadd.f32 %v948, %v868
    %v950 = vadd.f32 %v949, %v873
    %v951 = vadd.f32 %v950, %v876
    %v952 = vadd.f32 %v951, %v881
    %v953 = vadd.f32 %v952, %v884
    %v954 = vadd.f32 %v953, %v889
    %v955 = vadd.f32 %v954, %v892
    %v956 = vadd.f32 %v955, %v897
    %v957 = vadd.f32 %v956, %v900
    %v958 = vadd.f32 %v957, %v905
    %v959 = vadd.f32 %v958, %v908
    %v960 = vadd.f32 %v959, %v913
    %v961 = vadd.f32 %v960, %v916
    %v962 = vadd.f32 %v961, %v921
    %v963 = vadd.f32 %v962, %v924
    %v964 = vadd.f32 %v963, %v929
    %v965 = vadd.f32 %v964, %v932
    %v966 = vrot.slane %v965, 4
    %v967 = vadd.f32 %v965, %v966
    %v968 = vrot.slane %v967, 2
    %v969 = vadd.f32 %v967, %v968
    %v970 = vrot.slane %v969, 1
    %v971 = vadd.f32 %v969, %v970
    %v972 = vmul.f32 %v809, %v809
    %v973 = vmul.f32 %v812, %v812
    %v974 = vmul.f32 %v817, %v817
    %v975 = vmul.f32 %v820, %v820
    %v976 = vmul.f32 %v825, %v825
    %v977 = vmul.f32 %v828, %v828
    %v978 = vmul.f32 %v833, %v833
    %v979 = vmul.f32 %v836, %v836
    %v980 = vmul.f32 %v841, %v841
    %v981 = vmul.f32 %v844, %v844
    %v982 = vmul.f32 %v849, %v849
    %v983 = vmul.f32 %v852, %v852
    %v984 = vmul.f32 %v857, %v857
    %v985 = vmul.f32 %v860, %v860
    %v986 = vmul.f32 %v865, %v865
    %v987 = vmul.f32 %v868, %v868
    %v988 = vmul.f32 %v873, %v873
    %v989 = vmul.f32 %v876, %v876
    %v990 = vmul.f32 %v881, %v881
    %v991 = vmul.f32 %v884, %v884
    %v992 = vmul.f32 %v889, %v889
    %v993 = vmul.f32 %v892, %v892
    %v994 = vmul.f32 %v897, %v897
    %v995 = vmul.f32 %v900, %v900
    %v996 = vmul.f32 %v905, %v905
    %v997 = vmul.f32 %v908, %v908
    %v998 = vmul.f32 %v913, %v913
    %v999 = vmul.f32 %v916, %v916
    %v1000 = vmul.f32 %v921, %v921
    %v1001 = vmul.f32 %v924, %v924
    %v1002 = vmul.f32 %v929, %v929
    %v1003 = vmul.f32 %v932, %v932
    %v1004 = vadd.f32 %v972, %v973
    %v1005 = vadd.f32 %v1004, %v974
    %v1006 = vadd.f32 %v1005, %v975
    %v1007 = vadd.f32 %v1006, %v976
    %v1008 = vadd.f32 %v1007, %v977
    %v1009 = vadd.f32 %v1008, %v978
    %v1010 = vadd.f32 %v1009, %v979
    %v1011 = vadd.f32 %v1010, %v980
    %v1012 = vadd.f32 %v1011, %v981
    %v1013 = vadd.f32 %v1012, %v982
    %v1014 = vadd.f32 %v1013, %v983
    %v1015 = vadd.f32 %v1014, %v984
    %v1016 = vadd.f32 %v1015, %v985
    %v1017 = vadd.f32 %v1016, %v986
    %v1018 = vadd.f32 %v1017, %v987
    %v1019 = vadd.f32 %v1018, %v988
    %v1020 = vadd.f32 %v1019, %v989
    %v1021 = vadd.f32 %v1020, %v990
    %v1022 = vadd.f32 %v1021, %v991
    %v1023 = vadd.f32 %v1022, %v992
    %v1024 = vadd.f32 %v1023, %v993
    %v1025 = vadd.f32 %v1024, %v994
    %v1026 = vadd.f32 %v1025, %v995
    %v1027 = vadd.f32 %v1026, %v996
    %v1028 = vadd.f32 %v1027, %v997
    %v1029 = vadd.f32 %v1028, %v998
    %v1030 = vadd.f32 %v1029, %v999
    %v1031 = vadd.f32 %v1030, %v1000
    %v1032 = vadd.f32 %v1031, %v1001
    %v1033 = vadd.f32 %v1032, %v1002
    %v1034 = vadd.f32 %v1033, %v1003
    %v1035 = vrot.slane %v1034, 4
    %v1036 = vadd.f32 %v1034, %v1035
    %v1037 = vrot.slane %v1036, 2
    %v1038 = vadd.f32 %v1036, %v1037
    %v1039 = vrot.slane %v1038, 1
    %v1040 = vadd.f32 %v1038, %v1039
    %1041 = vrot.lane.b32.xlu0 %v971, 64
    %v1042 = vpop.permute.xlu0 %1041
    %v1043 = vadd.f32 %v971, %v1042
    %1044 = vrot.lane.b32.xlu0 %v1040, 64
    %v1045 = vpop.permute.xlu0 %1044
    %v1046 = vadd.f32 %v1040, %v1045
    %v1047 = vmul.f32 %v1043, 0.001953125
    %v1048 = vmul.f32 %v1046, 0.001953125
    %v1049 = vmul.f32 %v1047, %v1047
    %v1050 = vsub.f32 %v1048, %v1049
    %v1051 = vlaneseq
    %v1052 = vshrl.u32 %v1051, 7
    %v1053 = vsub.s32 0, %v1052
    %v1054 = vrot.slane %v1047, %v1053
    %v1055 = vsub.f32 %v809, %v1054
    %v1056 = vsub.f32 %v812, %v1054
    %v1057 = vsub.f32 %v817, %v1054
    %v1058 = vsub.f32 %v820, %v1054
    %v1059 = vsub.f32 %v825, %v1054
    %v1060 = vsub.f32 %v828, %v1054
    %v1061 = vsub.f32 %v833, %v1054
    %v1062 = vsub.f32 %v836, %v1054
    %v1063 = vsub.f32 %v841, %v1054
    %v1064 = vsub.f32 %v844, %v1054
    %v1065 = vsub.f32 %v849, %v1054
    %v1066 = vsub.f32 %v852, %v1054
    %v1067 = vsub.f32 %v857, %v1054
    %v1068 = vsub.f32 %v860, %v1054
    %v1069 = vsub.f32 %v865, %v1054
    %v1070 = vsub.f32 %v868, %v1054
    %v1071 = vsub.f32 %v873, %v1054
    %v1072 = vsub.f32 %v876, %v1054
    %v1073 = vsub.f32 %v881, %v1054
    %v1074 = vsub.f32 %v884, %v1054
    %v1075 = vsub.f32 %v889, %v1054
    %v1076 = vsub.f32 %v892, %v1054
    %v1077 = vsub.f32 %v897, %v1054
    %v1078 = vsub.f32 %v900, %v1054
    %v1079 = vsub.f32 %v905, %v1054
    %v1080 = vsub.f32 %v908, %v1054
    %v1081 = vsub.f32 %v913, %v1054
    %v1082 = vsub.f32 %v916, %v1054
    %v1083 = vsub.f32 %v921, %v1054
    %v1084 = vsub.f32 %v924, %v1054
    %v1085 = vsub.f32 %v929, %v1054
    %v1086 = vsub.f32 %v932, %v1054
    %v1087 = vadd.f32 %v1050, 1e-05
    %v1088 = vrsqrt.pop %v1087
    %v1089 = vlaneseq
    %v1090 = vshrl.u32 %v1089, 7
    %v1091 = vsub.s32 0, %v1090
    %v1092 = vrot.slane %v1088, %v1091
    %v1093 = vmul.f32 %v1055, %v1092
    %v1094 = vmul.f32 %v1056, %v1092
    %v1095 = vmul.f32 %v1057, %v1092
    %v1096 = vmul.f32 %v1058, %v1092
    %v1097 = vmul.f32 %v1059, %v1092
    %v1098 = vmul.f32 %v1060, %v1092
    %v1099 = vmul.f32 %v1061, %v1092
    %v1100 = vmul.f32 %v1062, %v1092
    %v1101 = vmul.f32 %v1063, %v1092
    %v1102 = vmul.f32 %v1064, %v1092
    %v1103 = vmul.f32 %v1065, %v1092
    %v1104 = vmul.f32 %v1066, %v1092
    %v1105 = vmul.f32 %v1067, %v1092
    %v1106 = vmul.f32 %v1068, %v1092
    %v1107 = vmul.f32 %v1069, %v1092
    %v1108 = vmul.f32 %v1070, %v1092
    %v1109 = vmul.f32 %v1071, %v1092
    %v1110 = vmul.f32 %v1072, %v1092
    %v1111 = vmul.f32 %v1073, %v1092
    %v1112 = vmul.f32 %v1074, %v1092
    %v1113 = vmul.f32 %v1075, %v1092
    %v1114 = vmul.f32 %v1076, %v1092
    %v1115 = vmul.f32 %v1077, %v1092
    %v1116 = vmul.f32 %v1078, %v1092
    %v1117 = vmul.f32 %v1079, %v1092
    %v1118 = vmul.f32 %v1080, %v1092
    %v1119 = vmul.f32 %v1081, %v1092
    %v1120 = vmul.f32 %v1082, %v1092
    %v1121 = vmul.f32 %v1083, %v1092
    %v1122 = vmul.f32 %v1084, %v1092
    %v1123 = vmul.f32 %v1085, %v1092
    %v1124 = vmul.f32 %v1086, %v1092
    %v1125 = vld [vmem:[%s5] sm:$0x1]
    %v1127 = vlaneseq
    %v1128 = vshrl.u32 %v1127, 7
    %v1129 = vsub.s32 0, %v1128
    %v1130 = vrot.slane %v1125, %v1129
    %v1132 = vmul.f32 %v1093, %v1130
    %v1133 = vmul.f32 %v1094, %v1130
    %v1134 = vmul.f32 %v1095, %v1130
    %v1135 = vmul.f32 %v1096, %v1130
    %v1136 = vmul.f32 %v1097, %v1130
    %v1137 = vmul.f32 %v1098, %v1130
    %v1138 = vmul.f32 %v1099, %v1130
    %v1139 = vmul.f32 %v1100, %v1130
    %v1140 = vmul.f32 %v1101, %v1130
    %v1141 = vmul.f32 %v1102, %v1130
    %v1142 = vmul.f32 %v1103, %v1130
    %v1143 = vmul.f32 %v1104, %v1130
    %v1144 = vmul.f32 %v1105, %v1130
    %v1145 = vmul.f32 %v1106, %v1130
    %v1146 = vmul.f32 %v1107, %v1130
    %v1147 = vmul.f32 %v1108, %v1130
    %v1148 = vmul.f32 %v1109, %v1130
    %v1149 = vmul.f32 %v1110, %v1130
    %v1150 = vmul.f32 %v1111, %v1130
    %v1151 = vmul.f32 %v1112, %v1130
    %v1152 = vmul.f32 %v1113, %v1130
    %v1153 = vmul.f32 %v1114, %v1130
    %v1154 = vmul.f32 %v1115, %v1130
    %v1155 = vmul.f32 %v1116, %v1130
    %v1156 = vmul.f32 %v1117, %v1130
    %v1157 = vmul.f32 %v1118, %v1130
    %v1158 = vmul.f32 %v1119, %v1130
    %v1159 = vmul.f32 %v1120, %v1130
    %v1160 = vmul.f32 %v1121, %v1130
    %v1161 = vmul.f32 %v1122, %v1130
    %v1162 = vmul.f32 %v1123, %v1130
    %v1163 = vmul.f32 %v1124, %v1130
    %v1164 = vld [vmem:[%s6] sm:$0x1]
    %v1166 = vlaneseq
    %v1167 = vshrl.u32 %v1166, 7
    %v1168 = vsub.s32 0, %v1167
    %v1169 = vrot.slane %v1164, %v1168
    %v1171 = vadd.f32 %v1132, %v1169
    %v1172 = vadd.f32 %v1133, %v1169
    %v1173 = vadd.f32 %v1134, %v1169
    %v1174 = vadd.f32 %v1135, %v1169
    %v1175 = vadd.f32 %v1136, %v1169
    %v1176 = vadd.f32 %v1137, %v1169
    %v1177 = vadd.f32 %v1138, %v1169
    %v1178 = vadd.f32 %v1139, %v1169
    %v1179 = vadd.f32 %v1140, %v1169
    %v1180 = vadd.f32 %v1141, %v1169
    %v1181 = vadd.f32 %v1142, %v1169
    %v1182 = vadd.f32 %v1143, %v1169
    %v1183 = vadd.f32 %v1144, %v1169
    %v1184 = vadd.f32 %v1145, %v1169
    %v1185 = vadd.f32 %v1146, %v1169
    %v1186 = vadd.f32 %v1147, %v1169
    %v1187 = vadd.f32 %v1148, %v1169
    %v1188 = vadd.f32 %v1149, %v1169
    %v1189 = vadd.f32 %v1150, %v1169
    %v1190 = vadd.f32 %v1151, %v1169
    %v1191 = vadd.f32 %v1152, %v1169
    %v1192 = vadd.f32 %v1153, %v1169
    %v1193 = vadd.f32 %v1154, %v1169
    %v1194 = vadd.f32 %v1155, %v1169
    %v1195 = vadd.f32 %v1156, %v1169
    %v1196 = vadd.f32 %v1157, %v1169
    %v1197 = vadd.f32 %v1158, %v1169
    %v1198 = vadd.f32 %v1159, %v1169
    %v1199 = vadd.f32 %v1160, %v1169
    %v1200 = vadd.f32 %v1161, %v1169
    %v1201 = vadd.f32 %v1162, %v1169
    %v1202 = vadd.f32 %v1163, %v1169
    %v1203 = vmax.f32 %v1171, 0.0
    %v1204 = vmax.f32 %v1172, 0.0
    %v1205 = vmax.f32 %v1173, 0.0
    %v1206 = vmax.f32 %v1174, 0.0
    %v1207 = vmax.f32 %v1175, 0.0
    %v1208 = vmax.f32 %v1176, 0.0
    %v1209 = vmax.f32 %v1177, 0.0
    %v1210 = vmax.f32 %v1178, 0.0
    %v1211 = vmax.f32 %v1179, 0.0
    %v1212 = vmax.f32 %v1180, 0.0
    %v1213 = vmax.f32 %v1181, 0.0
    %v1214 = vmax.f32 %v1182, 0.0
    %v1215 = vmax.f32 %v1183, 0.0
    %v1216 = vmax.f32 %v1184, 0.0
    %v1217 = vmax.f32 %v1185, 0.0
    %v1218 = vmax.f32 %v1186, 0.0
    %v1219 = vmax.f32 %v1187, 0.0
    %v1220 = vmax.f32 %v1188, 0.0
    %v1221 = vmax.f32 %v1189, 0.0
    %v1222 = vmax.f32 %v1190, 0.0
    %v1223 = vmax.f32 %v1191, 0.0
    %v1224 = vmax.f32 %v1192, 0.0
    %v1225 = vmax.f32 %v1193, 0.0
    %v1226 = vmax.f32 %v1194, 0.0
    %v1227 = vmax.f32 %v1195, 0.0
    %v1228 = vmax.f32 %v1196, 0.0
    %v1229 = vmax.f32 %v1197, 0.0
    %v1230 = vmax.f32 %v1198, 0.0
    %v1231 = vmax.f32 %v1199, 0.0
    %v1232 = vmax.f32 %v1200, 0.0
    %v1233 = vmax.f32 %v1201, 0.0
    %v1234 = vmax.f32 %v1202, 0.0
    %v1235 = vpack.c.bf16 %v1204, %v1203
    %v1236 = vpack.c.bf16 %v1206, %v1205
    %v1237 = vpack.c.bf16 %v1208, %v1207
    %v1238 = vpack.c.bf16 %v1210, %v1209
    %v1239 = vpack.c.bf16 %v1212, %v1211
    %v1240 = vpack.c.bf16 %v1214, %v1213
    %v1241 = vpack.c.bf16 %v1216, %v1215
    %v1242 = vpack.c.bf16 %v1218, %v1217
    %v1243 = vpack.c.bf16 %v1220, %v1219
    %v1244 = vpack.c.bf16 %v1222, %v1221
    %v1245 = vpack.c.bf16 %v1224, %v1223
    %v1246 = vpack.c.bf16 %v1226, %v1225
    %v1247 = vpack.c.bf16 %v1228, %v1227
    %v1248 = vpack.c.bf16 %v1230, %v1229
    %v1249 = vpack.c.bf16 %v1232, %v1231
    %v1250 = vpack.c.bf16 %v1234, %v1233
    %v1251 = vld [vmem:[%s7] sm:$0xf]
    %v1252 = vld [vmem:[%s7 + $0x4] sm:$0xf]
    %v1253 = vld [vmem:[%s7 + $0x8] sm:$0xf]
    %v1254 = vld [vmem:[%s7 + $0xc] sm:$0xf]
    %v1255 = vld [vmem:[%s7 + $0x10] sm:$0xf]
    %v1256 = vld [vmem:[%s7 + $0x14] sm:$0xf]
    %v1257 = vld [vmem:[%s7 + $0x18] sm:$0xf]
    %v1258 = vld [vmem:[%s7 + $0x1c] sm:$0xf]
    %v1259 = vld [vmem:[%s7 + $0x20] sm:$0xf]
    %v1260 = vld [vmem:[%s7 + $0x24] sm:$0xf]
    %v1261 = vld [vmem:[%s7 + $0x28] sm:$0xf]
    %v1262 = vld [vmem:[%s7 + $0x2c] sm:$0xf]
    %v1263 = vld [vmem:[%s7 + $0x30] sm:$0xf]
    %v1264 = vld [vmem:[%s7 + $0x34] sm:$0xf]
    %v1265 = vld [vmem:[%s7 + $0x38] sm:$0xf]
    %v1266 = vld [vmem:[%s7 + $0x3c] sm:$0xf]
    %v1283 = vunpack.c.l.b16 %v1251
    %v1284 = vunpack.c.l.b16 %v1252
    %v1285 = vunpack.c.l.b16 %v1253
    %v1286 = vunpack.c.l.b16 %v1254
    %v1287 = vunpack.c.l.b16 %v1255
    %v1288 = vunpack.c.l.b16 %v1256
    %v1289 = vunpack.c.l.b16 %v1257
    %v1290 = vunpack.c.l.b16 %v1258
    %v1291 = vunpack.c.l.b16 %v1259
    %v1292 = vunpack.c.l.b16 %v1260
    %v1293 = vunpack.c.l.b16 %v1261
    %v1294 = vunpack.c.l.b16 %v1262
    %v1295 = vunpack.c.l.b16 %v1263
    %v1296 = vunpack.c.l.b16 %v1264
    %v1297 = vunpack.c.l.b16 %v1265
    %v1298 = vunpack.c.l.b16 %v1266
    %v1299 = vpack.c.b16 %v1284, %v1283
    %v1300 = vpack.c.b16 %v1286, %v1285
    %v1301 = vpack.c.b16 %v1288, %v1287
    %v1302 = vpack.c.b16 %v1290, %v1289
    %v1303 = vpack.c.b16 %v1292, %v1291
    %v1304 = vpack.c.b16 %v1294, %v1293
    %v1305 = vpack.c.b16 %v1296, %v1295
    %v1306 = vpack.c.b16 %v1298, %v1297
    %1315 = vmatprep.subr.bf16.mxu0 0
    %1316 = vmatpush1.bf16.msra.mxu0 %v1306
    %1317 = vmatprep.subr.bf16.mxu0 0
    %1318 = vmatpush1.bf16.msra.mxu0 %v1305
    %1319 = vmatprep.subr.bf16.mxu0 0
    %1320 = vmatpush1.bf16.msra.mxu0 %v1304
    %1321 = vmatprep.subr.bf16.mxu0 0
    %1322 = vmatpush1.bf16.msra.mxu0 %v1303
    %1323 = vmatprep.subr.bf16.mxu0 0
    %1324 = vmatpush1.bf16.msra.mxu0 %v1302
    %1325 = vmatprep.subr.bf16.mxu0 0
    %1326 = vmatpush1.bf16.msra.mxu0 %v1301
    %1327 = vmatprep.subr.bf16.mxu0 0
    %1328 = vmatpush1.bf16.msra.mxu0 %v1300
    %1329 = vmatprep.subr.bf16.mxu0 0
    %1330 = vmatpush1.bf16.msra.mxu0 %v1299
    %1331 = vmatprep.subr.bf16.mxu0 0
    %1332 = vmatpush2.bf16.msra.mxu0 0
    %1333 = vmatprep.subr.bf16.mxu0 0
    %1334 = vmatpush2.bf16.msra.mxu0 0
    %1335 = vmatprep.subr.bf16.mxu0 0
    %1336 = vmatpush2.bf16.msra.mxu0 0
    %1337 = vmatprep.subr.bf16.mxu0 0
    %1338 = vmatpush2.bf16.msra.mxu0 0
    %1339 = vmatprep.subr.bf16.mxu0 0
    %1340 = vmatpush2.bf16.msra.mxu0 0
    %1341 = vmatprep.subr.bf16.mxu0 0
    %1342 = vmatpush2.bf16.msra.mxu0 0
    %1343 = vmatprep.subr.bf16.mxu0 0
    %1344 = vmatpush2.bf16.msra.mxu0 0
    %1345 = vmatprep.subr.bf16.mxu0 0
    %1346 = vmatpush2.bf16.msra.mxu0 0
    %1347 = vmatprep.mubr.bf16.mxu0 0
    %1348 = vmatmul.mubr.bf16.gmra.mxu0 %v1235
    %v1349 = vpop.f32.mrf.mxu0
    %v1350 = vadd.f32 0.0, %v1349
    %v1351 = vpop.f32.mrf.mxu0
    %v1352 = vpop.f32.mrf.mxu0
    %v1353 = vadd.f32 0.0, %v1352
    %v1354 = vpop.f32.mrf.mxu0
    %1355 = vmatprep.mubr.bf16.mxu0 0
    %1356 = vmatmul.mubr.bf16.gmra.mxu0 %v1236
    %v1357 = vpop.f32.mrf.mxu0
    %v1358 = vadd.f32 0.0, %v1357
    %v1359 = vpop.f32.mrf.mxu0
    %v1360 = vpop.f32.mrf.mxu0
    %v1361 = vadd.f32 0.0, %v1360
    %v1362 = vpop.f32.mrf.mxu0
    %1363 = vmatprep.mubr.bf16.mxu0 0
    %1364 = vmatmul.mubr.bf16.gmra.mxu0 %v1237
    %v1365 = vpop.f32.mrf.mxu0
    %v1366 = vadd.f32 0.0, %v1365
    %v1367 = vpop.f32.mrf.mxu0
    %v1368 = vpop.f32.mrf.mxu0
    %v1369 = vadd.f32 0.0, %v1368
    %v1370 = vpop.f32.mrf.mxu0
    %1371 = vmatprep.mubr.bf16.mxu0 0
    %1372 = vmatmul.mubr.bf16.gmra.mxu0 %v1238
    %v1373 = vpop.f32.mrf.mxu0
    %v1374 = vadd.f32 0.0, %v1373
    %v1375 = vpop.f32.mrf.mxu0
    %v1376 = vpop.f32.mrf.mxu0
    %v1377 = vadd.f32 0.0, %v1376
    %v1378 = vpop.f32.mrf.mxu0
    %1379 = vmatprep.mubr.bf16.mxu0 0
    %1380 = vmatmul.mubr.bf16.gmra.mxu0 %v1239
    %v1381 = vpop.f32.mrf.mxu0
    %v1382 = vadd.f32 0.0, %v1381
    %v1383 = vpop.f32.mrf.mxu0
    %v1384 = vpop.f32.mrf.mxu0
    %v1385 = vadd.f32 0.0, %v1384
    %v1386 = vpop.f32.mrf.mxu0
    %1387 = vmatprep.mubr.bf16.mxu0 0
    %1388 = vmatmul.mubr.bf16.gmra.mxu0 %v1240
    %v1389 = vpop.f32.mrf.mxu0
    %v1390 = vadd.f32 0.0, %v1389
    %v1391 = vpop.f32.mrf.mxu0
    %v1392 = vpop.f32.mrf.mxu0
    %v1393 = vadd.f32 0.0, %v1392
    %v1394 = vpop.f32.mrf.mxu0
    %1395 = vmatprep.mubr.bf16.mxu0 0
    %1396 = vmatmul.mubr.bf16.gmra.mxu0 %v1241
    %v1397 = vpop.f32.mrf.mxu0
    %v1398 = vadd.f32 0.0, %v1397
    %v1399 = vpop.f32.mrf.mxu0
    %v1400 = vpop.f32.mrf.mxu0
    %v1401 = vadd.f32 0.0, %v1400
    %v1402 = vpop.f32.mrf.mxu0
    %1403 = vmatprep.mubr.bf16.mxu0 0
    %1404 = vmatmul.mubr.bf16.gmra.mxu0 %v1242
    %v1405 = vpop.f32.mrf.mxu0
    %v1406 = vadd.f32 0.0, %v1405
    %v1407 = vpop.f32.mrf.mxu0
    %v1408 = vpop.f32.mrf.mxu0
    %v1409 = vadd.f32 0.0, %v1408
    %v1410 = vpop.f32.mrf.mxu0
    %1411 = vmatprep.mubr.bf16.mxu0 0
    %1412 = vmatmul.mubr.bf16.gmra.mxu0 %v1243
    %v1413 = vpop.f32.mrf.mxu0
    %v1414 = vadd.f32 0.0, %v1413
    %v1415 = vpop.f32.mrf.mxu0
    %v1416 = vpop.f32.mrf.mxu0
    %v1417 = vadd.f32 0.0, %v1416
    %v1418 = vpop.f32.mrf.mxu0
    %1419 = vmatprep.mubr.bf16.mxu0 0
    %1420 = vmatmul.mubr.bf16.gmra.mxu0 %v1244
    %v1421 = vpop.f32.mrf.mxu0
    %v1422 = vadd.f32 0.0, %v1421
    %v1423 = vpop.f32.mrf.mxu0
    %v1424 = vpop.f32.mrf.mxu0
    %v1425 = vadd.f32 0.0, %v1424
    %v1426 = vpop.f32.mrf.mxu0
    %1427 = vmatprep.mubr.bf16.mxu0 0
    %1428 = vmatmul.mubr.bf16.gmra.mxu0 %v1245
    %v1429 = vpop.f32.mrf.mxu0
    %v1430 = vadd.f32 0.0, %v1429
    %v1431 = vpop.f32.mrf.mxu0
    %v1432 = vpop.f32.mrf.mxu0
    %v1433 = vadd.f32 0.0, %v1432
    %v1434 = vpop.f32.mrf.mxu0
    %1435 = vmatprep.mubr.bf16.mxu0 0
    %1436 = vmatmul.mubr.bf16.gmra.mxu0 %v1246
    %v1437 = vpop.f32.mrf.mxu0
    %v1438 = vadd.f32 0.0, %v1437
    %v1439 = vpop.f32.mrf.mxu0
    %v1440 = vpop.f32.mrf.mxu0
    %v1441 = vadd.f32 0.0, %v1440
    %v1442 = vpop.f32.mrf.mxu0
    %1443 = vmatprep.mubr.bf16.mxu0 0
    %1444 = vmatmul.mubr.bf16.gmra.mxu0 %v1247
    %v1445 = vpop.f32.mrf.mxu0
    %v1446 = vadd.f32 0.0, %v1445
    %v1447 = vpop.f32.mrf.mxu0
    %v1448 = vpop.f32.mrf.mxu0
    %v1449 = vadd.f32 0.0, %v1448
    %v1450 = vpop.f32.mrf.mxu0
    %1451 = vmatprep.mubr.bf16.mxu0 0
    %1452 = vmatmul.mubr.bf16.gmra.mxu0 %v1248
    %v1453 = vpop.f32.mrf.mxu0
    %v1454 = vadd.f32 0.0, %v1453
    %v1455 = vpop.f32.mrf.mxu0
    %v1456 = vpop.f32.mrf.mxu0
    %v1457 = vadd.f32 0.0, %v1456
    %v1458 = vpop.f32.mrf.mxu0
    %1459 = vmatprep.mubr.bf16.mxu0 0
    %1460 = vmatmul.mubr.bf16.gmra.mxu0 %v1249
    %v1461 = vpop.f32.mrf.mxu0
    %v1462 = vadd.f32 0.0, %v1461
    %v1463 = vpop.f32.mrf.mxu0
    %v1464 = vpop.f32.mrf.mxu0
    %v1465 = vadd.f32 0.0, %v1464
    %v1466 = vpop.f32.mrf.mxu0
    %1467 = vmatprep.mubr.bf16.mxu0 0
    %1468 = vmatmul.mubr.bf16.gmra.mxu0 %v1250
    %v1469 = vpop.f32.mrf.mxu0
    %v1470 = vadd.f32 0.0, %v1469
    %v1471 = vpop.f32.mrf.mxu0
    %v1472 = vpop.f32.mrf.mxu0
    %v1473 = vadd.f32 0.0, %v1472
    %v1474 = vpop.f32.mrf.mxu0
    %1475 = vdwg.mxu0
    %1476 = vst [vmem:[#allocation2] sm:$0xff] %v1350
    %1477 = vst [vmem:[#allocation2 + $0x8] sm:$0xff] %v1353
    %1478 = vst [vmem:[#allocation2 + $0x10] sm:$0xff] %v1358
    %1479 = vst [vmem:[#allocation2 + $0x18] sm:$0xff] %v1361
    %1480 = vst [vmem:[#allocation2 + $0x20] sm:$0xff] %v1366
    %1481 = vst [vmem:[#allocation2 + $0x28] sm:$0xff] %v1369
    %1482 = vst [vmem:[#allocation2 + $0x30] sm:$0xff] %v1374
    %1483 = vst [vmem:[#allocation2 + $0x38] sm:$0xff] %v1377
    %1484 = vst [vmem:[#allocation2 + $0x40] sm:$0xff] %v1382
    %1485 = vst [vmem:[#allocation2 + $0x48] sm:$0xff] %v1385
    %1486 = vst [vmem:[#allocation2 + $0x50] sm:$0xff] %v1390
    %1487 = vst [vmem:[#allocation2 + $0x58] sm:$0xff] %v1393
    %1488 = vst [vmem:[#allocation2 + $0x60] sm:$0xff] %v1398
    %1489 = vst [vmem:[#allocation2 + $0x68] sm:$0xff] %v1401
    %1490 = vst [vmem:[#allocation2 + $0x70] sm:$0xff] %v1406
    %1491 = vst [vmem:[#allocation2 + $0x78] sm:$0xff] %v1409
    %1492 = vst [vmem:[#allocation2 + $0x80] sm:$0xff] %v1414
    %1493 = vst [vmem:[#allocation2 + $0x88] sm:$0xff] %v1417
    %1494 = vst [vmem:[#allocation2 + $0x90] sm:$0xff] %v1422
    %1495 = vst [vmem:[#allocation2 + $0x98] sm:$0xff] %v1425
    %1496 = vst [vmem:[#allocation2 + $0xa0] sm:$0xff] %v1430
    %1497 = vst [vmem:[#allocation2 + $0xa8] sm:$0xff] %v1433
    %1498 = vst [vmem:[#allocation2 + $0xb0] sm:$0xff] %v1438
    %1499 = vst [vmem:[#allocation2 + $0xb8] sm:$0xff] %v1441
    %1500 = vst [vmem:[#allocation2 + $0xc0] sm:$0xff] %v1446
    %1501 = vst [vmem:[#allocation2 + $0xc8] sm:$0xff] %v1449
    %1502 = vst [vmem:[#allocation2 + $0xd0] sm:$0xff] %v1454
    %1503 = vst [vmem:[#allocation2 + $0xd8] sm:$0xff] %v1457
    %1504 = vst [vmem:[#allocation2 + $0xe0] sm:$0xff] %v1462
    %1505 = vst [vmem:[#allocation2 + $0xe8] sm:$0xff] %v1465
    %1506 = vst [vmem:[#allocation2 + $0xf0] sm:$0xff] %v1470
    %1507 = vst [vmem:[#allocation2 + $0xf8] sm:$0xff] %v1473
    // Predicated region
    $region34: #{tpu_custom_call.1} parent=1 // pred_check
      _
    $region35: #{tpu_custom_call.1} parent=1 // pred_check_branch
      %1509 = sbr.rel (0) target = $region37
    $region36: #{tpu_custom_call.1} parent=1 // pred_region
      %s1511 = ssub.s32 4096, 4096
      %1512 = vsyncadd [#allocation3], %s1511
      %s1513 = sshll.u32 [#allocation2], 4
      %s1514 = int_to_ptr.vmem [resolvable:$true] %s1513
      %1519 = dma.vmem_to_hbm [thread:$0]  %s1514, 4096, %s8, [#allocation3], 128, 128, 8
    $region37: #{tpu_custom_call.1} parent=1 // pred_fallthru
      _
    // Predicated region
    $region38: #{tpu_custom_call.1} parent=1 // pred_check
      _
    $region39: #{tpu_custom_call.1} parent=1 // pred_check_branch
      %1521 = sbr.rel (0) target = $region41
    $region40: #{tpu_custom_call.1} parent=1 // pred_region
      %1522 = dma.done [#allocation3], 4096
    $region41: #{tpu_custom_call.1} parent=1 // pred_fallthru
      _
    %1523 = vsyncpa [#allocation3], 1

</llo_original>
